<compile_context>
chip_gen: v5e
topology: v5e:2x2
jax: 0.10.0
libtpu: 0.0.40
codegen_flags: <defaults>
</compile_context>

<pallas_src>
import functools

import jax
import jax.numpy as jnp
from jax.experimental import pallas as pl
from jax.experimental.pallas import tpu as pltpu

EPS = 1e-5
LANES = 128


def _round_up(x, m):
    return ((x + m - 1) // m) * m


# ---------------------------------------------------------------------------
# Fused BasicBlock kernel (one batch element per grid step)
# ---------------------------------------------------------------------------
def _basic_block_kernel(x_ref, w1_ref, b1_ref, w2_ref, b2_ref, out_ref,
                        xpad_ref, ypad_ref, *,
                        hin, win, craw, ho, wo, kdim, downsample):
    """Fused BasicBlock forward for one batch element.

    x_ref  : (1, hin, win, craw)   raw input (stride=1) or space-to-depth
                                   input (stride=2, craw = 4*Cin)
    w1_ref : (kdim*kdim*c1p, cout_p)  conv1 weights, BN1 scale folded, tap-major
    b1_ref : (1, cout_p)              BN1 bias (beta - mean*scale)
    w2_ref : (9*cout_p [+ c1p], cout_p)  conv2 weights (BN2 folded); if the
                                         block has a downsample branch, the
                                         folded 1x1 shortcut weights are
                                         stacked below the conv2 rows.
    b2_ref : (1, cout_p)              BN2 bias (+ shortcut BN bias if fused)
    out_ref: (1, ho, wo, cout_p)
    xpad   : (ho+kdim-1, wo+kdim-1, c1p)   VMEM scratch (zero-padded input)
    ypad   : (ho+2, wo+2, cout_p)          VMEM scratch (zero-padded conv1 out)
    """
    c1p = xpad_ref.shape[-1]
    cout_p = out_ref.shape[-1]
    hw = ho * wo

    # --- stage 0: zero-pad the input tile into VMEM (halo + channel pad) ----
    xpad_ref[...] = jnp.zeros_like(xpad_ref)
    xpad_ref[pl.ds(1, hin), pl.ds(1, win), pl.ds(0, craw)] = (
        x_ref[0].astype(jnp.float32))

    # --- stage 1: conv1 as a single stacked-tap matmul, + bn1 + relu --------
    taps = []
    for kh in range(kdim):
        for kw in range(kdim):
            taps.append(
                xpad_ref[pl.ds(kh, ho), pl.ds(kw, wo), :].reshape(hw, c1p))
    patch1 = jnp.concatenate(taps, axis=-1)                # (hw, kdim^2 * c1p)
    y1 = jnp.dot(patch1, w1_ref[...], preferred_element_type=jnp.float32)
    y1 = jnp.maximum(y1 + b1_ref[...], 0.0)                # (hw, cout_p)

    # --- stage 2: zero-pad conv1 output in VMEM for conv2 -------------------
    ypad_ref[...] = jnp.zeros_like(ypad_ref)
    ypad_ref[pl.ds(1, ho), pl.ds(1, wo), :] = y1.reshape(ho, wo, cout_p)

    # --- stage 3: conv2 (+ fused 1x1 downsample) as ONE matmul, + bn --------
    taps2 = []
    for kh in range(3):
        for kw in range(3):
            taps2.append(
                ypad_ref[pl.ds(kh, ho), pl.ds(kw, wo), :].reshape(hw, cout_p))
    xi = xpad_ref[pl.ds(1, ho), pl.ds(1, wo), :].reshape(hw, c1p)
    if downsample:
        # residual 1x1 conv is just extra K columns of the same matmul
        taps2.append(xi)
    patch2 = jnp.concatenate(taps2, axis=-1)
    y2 = jnp.dot(patch2, w2_ref[...], preferred_element_type=jnp.float32)
    y2 = y2 + b2_ref[...]

    # --- stage 4: identity residual (when no downsample) --------------------
    if not downsample:
        y2 = y2 + xi                                       # c1p == cout_p here

    # --- stage 5: relu + lane-dense store ------------------------------------
    out_ref[0] = jnp.maximum(y2, 0.0).reshape(ho, wo, cout_p).astype(
        out_ref.dtype)


# ---------------------------------------------------------------------------
# Weight / bias preparation (BN folded into conv weights; padded slabs)
# ---------------------------------------------------------------------------
def _fold_bn(gamma, beta, mean, var):
    scale = gamma / jnp.sqrt(var + EPS)
    bias = beta - mean * scale
    return scale, bias


def _prep_conv3x3(w_oihw, scale, cin_p, cout_p):
    """(Cout,Cin,3,3) -> (9*cin_p, cout_p) tap-major slab with BN scale folded."""
    cout, cin = w_oihw.shape[0], w_oihw.shape[1]
    w = (w_oihw * scale[:, None, None, None]).astype(jnp.float32)
    w = jnp.transpose(w, (2, 3, 1, 0))                     # (kh, kw, cin, cout)
    slab = jnp.zeros((3, 3, cin_p, cout_p), jnp.float32)
    slab = slab.at[:, :, :cin, :cout].set(w)
    return slab.reshape(9 * cin_p, cout_p)


def _prep_conv1_s2d(w_oihw, scale, cin, cs_p, cout_p):
    """Stride-2 3x3 conv re-expressed as a stride-1 2x2 conv over the
    space-to-depth input (channels ordered (p, q, c))."""
    cout = w_oihw.shape[0]
    w = (w_oihw * scale[:, None, None, None]).astype(jnp.float32)
    w = jnp.transpose(w, (2, 3, 1, 0))                     # (kh, kw, cin, cout)
    # kh -> (tap t, phase p): 0 -> (0,1), 1 -> (1,0), 2 -> (1,1); (0,0) unused.
    tp = {0: (0, 1), 1: (1, 0), 2: (1, 1)}
    slab = jnp.zeros((2, 2, 2, 2, cin, cout), jnp.float32)  # [t, u, p, q, c, o]
    for kh in range(3):
        t, p = tp[kh]
        for kw in range(3):
            u, q = tp[kw]
            slab = slab.at[t, u, p, q].set(w[kh, kw])
    slab = slab.reshape(2, 2, 4 * cin, cout)               # idx = (p*2+q)*cin + c
    full = jnp.zeros((2, 2, cs_p, cout_p), jnp.float32)
    full = full.at[:, :, :4 * cin, :cout].set(slab)
    return full.reshape(4 * cs_p, cout_p)


def _prep_conv1x1(w_oihw, scale, rows_p, cout_p):
    cout, cin = w_oihw.shape[0], w_oihw.shape[1]
    w = (w_oihw[:, :, 0, 0] * scale[:, None]).astype(jnp.float32)  # (cout, cin)
    slab = jnp.zeros((rows_p, cout_p), jnp.float32)
    slab = slab.at[:cin, :cout].set(jnp.transpose(w))
    return slab


def _prep_bias(bias, cout_p):
    b = jnp.zeros((1, cout_p), jnp.float32)
    return b.at[0, :bias.shape[0]].set(bias.astype(jnp.float32))


# ---------------------------------------------------------------------------
# Wrapper
# ---------------------------------------------------------------------------
def basic_block_forward(x_nchw, params, *, stride=1, downsample=False):
    """Pallas implementation of BasicBlock.forward (inference-mode BN)."""
    N, Cin, H, W = x_nchw.shape
    Cout = params["conv1"].shape[0]
    assert stride in (1, 2), "only stride 1 and 2 are supported"
    if not downsample:
        assert stride == 1 and Cin == Cout, \
            "identity shortcut needs stride=1 and matching channels"
    if stride == 2:
        assert H % 2 == 0 and W % 2 == 0

    x = jnp.transpose(x_nchw, (0, 2, 3, 1)).astype(jnp.float32)   # NCHW -> NHWC

    s1, b1 = _fold_bn(*params["bn1"])
    s2, b2 = _fold_bn(*params["bn2"])

    ho, wo = H // stride, W // stride
    cout_p = _round_up(Cout, LANES)

    if stride == 2:
        # space-to-depth: stride-2 3x3 conv == stride-1 2x2 conv on 4*Cin chans
        xk = x.reshape(N, ho, 2, wo, 2, Cin).transpose(0, 1, 3, 2, 4, 5)
        xk = xk.reshape(N, ho, wo, 4 * Cin)
        craw, kdim = 4 * Cin, 2
        c1p = _round_up(craw, LANES)
        w1s = _prep_conv1_s2d(params["conv1"], s1, Cin, c1p, cout_p)
    else:
        xk = x
        craw, kdim = Cin, 3
        c1p = _round_up(Cin, LANES)
        w1s = _prep_conv3x3(params["conv1"], s1, c1p, cout_p)

    b1v = _prep_bias(b1, cout_p)

    # conv2 slab; if downsampling, stack the folded 1x1 shortcut weights under
    # it so the kernel does conv2 + shortcut in a single MXU matmul.
    w2s = _prep_conv3x3(params["conv2"], s2, cout_p, cout_p)
    if downsample:
        sd, bd = _fold_bn(*params["bn_ds"])
        wds = _prep_conv1x1(params["conv_ds"], sd, c1p, cout_p)
        w2s = jnp.concatenate([w2s, wds], axis=0)          # (9*cout_p + c1p, cout_p)
        b2 = b2 + bd
    else:
        assert c1p == cout_p
    b2v = _prep_bias(b2, cout_p)

    args = [xk, w1s, b1v, w2s, b2v]
    in_specs = [
        pl.BlockSpec((1, ho, wo, craw), lambda n: (n, 0, 0, 0)),
        pl.BlockSpec(w1s.shape, lambda n: (0, 0)),
        pl.BlockSpec((1, cout_p), lambda n: (0, 0)),
        pl.BlockSpec(w2s.shape, lambda n: (0, 0)),
        pl.BlockSpec((1, cout_p), lambda n: (0, 0)),
    ]

    kernel = functools.partial(
        _basic_block_kernel, hin=ho, win=wo, craw=craw, ho=ho, wo=wo,
        kdim=kdim, downsample=downsample)

    out = pl.pallas_call(
        kernel,
        out_shape=jax.ShapeDtypeStruct((N, ho, wo, cout_p), jnp.float32),
        grid=(N,),
        in_specs=in_specs,
        out_specs=pl.BlockSpec((1, ho, wo, cout_p), lambda n: (n, 0, 0, 0)),
        scratch_shapes=[
            pltpu.VMEM((ho + kdim - 1, wo + kdim - 1, c1p), jnp.float32),
            pltpu.VMEM((ho + 2, wo + 2, cout_p), jnp.float32),
        ],
        compiler_params=pltpu.CompilerParams(
            dimension_semantics=("parallel",)),
    )(*args)

    out = out[..., :Cout]                                  # drop lane padding
    return jnp.transpose(out, (0, 3, 1, 2))                # NHWC -> NCHW


# ---------------------------------------------------------------------------
# Pure-JAX reference (mirrors the PyTorch module, eval-mode BN)
# ---------------------------------------------------------------------------
def _ref_forward(x, params, *, stride, downsample):
    def conv(x, w, s, p):
        return jax.lax.conv_general_dilated(
            x, w, (s, s), [(p, p), (p, p)],
            dimension_numbers=("NCHW", "OIHW", "NCHW"))

    def bn(x, g, b, m, v):
        sh = (1, -1, 1, 1)
        return (x - m.reshape(sh)) / jnp.sqrt(v.reshape(sh) + EPS) \
            * g.reshape(sh) + b.reshape(sh)

    i = x
    y = conv(x, params["conv1"], stride, 1)
    y = jnp.maximum(bn(y, *params["bn1"]), 0.0)
    y = conv(y, params["conv2"], 1, 1)
    y = bn(y, *params["bn2"])
    if downsample:
        i = bn(conv(i, params["conv_ds"], stride, 0), *params["bn_ds"])
    return jnp.maximum(y + i, 0.0)


# ---------------------------------------------------------------------------
def _make_params(key, cin, cout, downsample):
    ks = jax.random.split(key, 8)

    def bn_params(k):
        k1, k2, k3, k4 = jax.random.split(k, 4)
        gamma = jax.random.uniform(k1, (cout,), jnp.float32, 0.5, 1.5)
        beta = 0.1 * jax.random.normal(k2, (cout,), jnp.float32)
        mean = 0.1 * jax.random.normal(k3, (cout,), jnp.float32)
        var = jax.random.uniform(k4, (cout,), jnp.float32, 0.5, 1.5)
        return (gamma, beta, mean, var)

    params = {
        "conv1": 0.2 * jax.random.normal(ks[0], (cout, cin, 3, 3), jnp.float32),
        "conv2": 0.2 * jax.random.normal(ks[1], (cout, cout, 3, 3), jnp.float32),
        "bn1": bn_params(ks[2]),
        "bn2": bn_params(ks[3]),
    }
    if downsample:
        params["conv_ds"] = 0.2 * jax.random.normal(
            ks[4], (cout, cin, 1, 1), jnp.float32)
        params["bn_ds"] = bn_params(ks[5])
    return params


if __name__ == "__main__":
    key = jax.random.PRNGKey(0)
    kx, kp, kp2 = jax.random.split(key, 3)

    # Config A: stride-2 downsample block.
    N, Cin, Cout, H, W = 2, 4, 8, 16, 16
    x = jax.random.normal(kx, (N, Cin, H, W), jnp.float32)
    params = _make_params(kp, Cin, Cout, downsample=True)
    out = jax.block_until_ready(
        basic_block_forward(x, params, stride=2, downsample=True))
    ref = _ref_forward(x, params, stride=2, downsample=True)
    assert out.shape == ref.shape, (out.shape, ref.shape)
    assert jnp.allclose(out, ref, atol=1e-4, rtol=1e-4), \
        float(jnp.max(jnp.abs(out - ref)))

    # Config B: stride-1 identity block (no downsample).
    C = 8
    x2 = jax.random.normal(kx, (N, C, H, W), jnp.float32)
    params2 = _make_params(kp2, C, C, downsample=False)
    out2 = jax.block_until_ready(
        basic_block_forward(x2, params2, stride=1, downsample=False))
    ref2 = _ref_forward(x2, params2, stride=1, downsample=False)
    assert out2.shape == ref2.shape, (out2.shape, ref2.shape)
    assert jnp.allclose(out2, ref2, atol=1e-4, rtol=1e-4), \
        float(jnp.max(jnp.abs(out2 - ref2)))

    print("KERNEL_OK")
</pallas_src>

<mosaic_0001>
module attributes {stable_mosaic.version = 11 : i64} {
  func.func @_basic_block_kernel(%arg0: i32, %arg1: memref<1x8x8x16xf32, #tpu.memory_space<vmem>>, %arg2: memref<512x128xf32, #tpu.memory_space<vmem>>, %arg3: memref<1x128xf32, #tpu.memory_space<vmem>>, %arg4: memref<1280x128xf32, #tpu.memory_space<vmem>>, %arg5: memref<1x128xf32, #tpu.memory_space<vmem>>, %arg6: memref<1x8x8x128xf32, #tpu.memory_space<vmem>>, %arg7: memref<9x9x128xf32, #tpu.memory_space<vmem>>, %arg8: memref<10x10x128xf32, #tpu.memory_space<vmem>>) attributes {dimension_semantics = [#tpu.dimension_semantics<parallel>], iteration_bounds = array<i64: 2>, scalar_prefetch = 0 : i64, scratch_operands = 2 : i64, tpu.core_type = #tpu.core_type<tc>, window_params = [{transform_indices = @transform_0, window_bounds = array<i64: 1, 8, 8, 16>}, {pipeline_mode = #tpu.pipeline_mode<synchronous>, transform_indices = @transform_1, window_bounds = array<i64: 512, 128>}, {pipeline_mode = #tpu.pipeline_mode<synchronous>, transform_indices = @transform_2, window_bounds = array<i64: 1, 128>}, {pipeline_mode = #tpu.pipeline_mode<synchronous>, transform_indices = @transform_3, window_bounds = array<i64: 1280, 128>}, {pipeline_mode = #tpu.pipeline_mode<synchronous>, transform_indices = @transform_4, window_bounds = array<i64: 1, 128>}, {transform_indices = @transform_5, window_bounds = array<i64: 1, 8, 8, 128>}]} {
    %cst = arith.constant 0.000000e+00 : f32
    %0 = vector.broadcast %cst : f32 to vector<9x9x128xf32>
    %c0 = arith.constant 0 : index
    %c0_0 = arith.constant 0 : index
    %c0_1 = arith.constant 0 : index
    %1 = vector.load %arg7[%c0, %c0_0, %c0_1] : memref<9x9x128xf32, #tpu.memory_space<vmem>>, vector<9x9x128xf32>
    tpu.vector_store %arg7[%c0, %c0_0, %c0_1], %0 {strides = array<i32>} : memref<9x9x128xf32, #tpu.memory_space<vmem>>, vector<9x9x128xf32>,
    %c0_2 = arith.constant 0 : index
    %c0_3 = arith.constant 0 : index
    %c0_4 = arith.constant 0 : index
    %c0_5 = arith.constant 0 : index
    %2 = vector.load %arg1[%c0_2, %c0_3, %c0_4, %c0_5] : memref<1x8x8x16xf32, #tpu.memory_space<vmem>>, vector<1x8x8x16xf32>
    %3 = vector.shape_cast %2 : vector<1x8x8x16xf32> to vector<8x8x16xf32>
    %c1 = arith.constant 1 : index
    %c1_6 = arith.constant 1 : index
    %c0_7 = arith.constant 0 : index
    %4 = vector.load %arg7[%c1, %c1_6, %c0_7] : memref<9x9x128xf32, #tpu.memory_space<vmem>>, vector<8x8x16xf32>
    tpu.vector_store %arg7[%c1, %c1_6, %c0_7], %3 {strides = array<i32>} : memref<9x9x128xf32, #tpu.memory_space<vmem>>, vector<8x8x16xf32>,
    %c0_8 = arith.constant 0 : index
    %c0_9 = arith.constant 0 : index
    %c0_10 = arith.constant 0 : index
    %5 = vector.load %arg7[%c0_8, %c0_9, %c0_10] : memref<9x9x128xf32, #tpu.memory_space<vmem>>, vector<8x8x128xf32>
    %6 = vector.shape_cast %5 : vector<8x8x128xf32> to vector<64x128xf32>
    %c0_11 = arith.constant 0 : index
    %c1_12 = arith.constant 1 : index
    %c0_13 = arith.constant 0 : index
    %7 = vector.load %arg7[%c0_11, %c1_12, %c0_13] : memref<9x9x128xf32, #tpu.memory_space<vmem>>, vector<8x8x128xf32>
    %8 = vector.shape_cast %7 : vector<8x8x128xf32> to vector<64x128xf32>
    %c1_14 = arith.constant 1 : index
    %c0_15 = arith.constant 0 : index
    %c0_16 = arith.constant 0 : index
    %9 = vector.load %arg7[%c1_14, %c0_15, %c0_16] : memref<9x9x128xf32, #tpu.memory_space<vmem>>, vector<8x8x128xf32>
    %10 = vector.shape_cast %9 : vector<8x8x128xf32> to vector<64x128xf32>
    %c1_17 = arith.constant 1 : index
    %c1_18 = arith.constant 1 : index
    %c0_19 = arith.constant 0 : index
    %11 = vector.load %arg7[%c1_17, %c1_18, %c0_19] : memref<9x9x128xf32, #tpu.memory_space<vmem>>, vector<8x8x128xf32>
    %12 = vector.shape_cast %11 : vector<8x8x128xf32> to vector<64x128xf32>
    %13 = tpu.concatenate %6, %8, %10, %12 in 1 : vector<64x128xf32>, vector<64x128xf32>, vector<64x128xf32>, vector<64x128xf32> -> vector<64x512xf32>
    %c0_20 = arith.constant 0 : index
    %c0_21 = arith.constant 0 : index
    %14 = vector.load %arg2[%c0_20, %c0_21] : memref<512x128xf32, #tpu.memory_space<vmem>>, vector<512x128xf32>
    %cst_22 = arith.constant dense<0.000000e+00> : vector<64x128xf32>
    %15 = tpu.matmul %13, %14, %cst_22 {dimension_numbers = #tpu.dot_dimension_numbers<[1], [0], [0], [1], [0, 0, 1, 1], [], []>} : vector<64x512xf32>, vector<512x128xf32>, vector<64x128xf32> -> vector<64x128xf32>
    %c0_23 = arith.constant 0 : index
    %c0_24 = arith.constant 0 : index
    %16 = vector.load %arg3[%c0_23, %c0_24] : memref<1x128xf32, #tpu.memory_space<vmem>>, vector<1x128xf32>
    %17 = vector.broadcast %16 : vector<1x128xf32> to vector<64x128xf32>
    %18 = arith.addf %15, %17 : vector<64x128xf32>
    %cst_25 = arith.constant 0.000000e+00 : f32
    %19 = vector.broadcast %cst_25 : f32 to vector<64x128xf32>
    %20 = arith.maximumf %18, %19 : vector<64x128xf32>
    %cst_26 = arith.constant 0.000000e+00 : f32
    %21 = vector.broadcast %cst_26 : f32 to vector<10x10x128xf32>
    %c0_27 = arith.constant 0 : index
    %c0_28 = arith.constant 0 : index
    %c0_29 = arith.constant 0 : index
    %22 = vector.load %arg8[%c0_27, %c0_28, %c0_29] : memref<10x10x128xf32, #tpu.memory_space<vmem>>, vector<10x10x128xf32>
    tpu.vector_store %arg8[%c0_27, %c0_28, %c0_29], %21 {strides = array<i32>} : memref<10x10x128xf32, #tpu.memory_space<vmem>>, vector<10x10x128xf32>,
    %23 = vector.shape_cast %20 : vector<64x128xf32> to vector<8x8x128xf32>
    %c1_30 = arith.constant 1 : index
    %c1_31 = arith.constant 1 : index
    %c0_32 = arith.constant 0 : index
    %24 = vector.load %arg8[%c1_30, %c1_31, %c0_32] : memref<10x10x128xf32, #tpu.memory_space<vmem>>, vector<8x8x128xf32>
    tpu.vector_store %arg8[%c1_30, %c1_31, %c0_32], %23 {strides = array<i32>} : memref<10x10x128xf32, #tpu.memory_space<vmem>>, vector<8x8x128xf32>,
    %c0_33 = arith.constant 0 : index
    %c0_34 = arith.constant 0 : index
    %c0_35 = arith.constant 0 : index
    %25 = vector.load %arg8[%c0_33, %c0_34, %c0_35] : memref<10x10x128xf32, #tpu.memory_space<vmem>>, vector<8x8x128xf32>
    %26 = vector.shape_cast %25 : vector<8x8x128xf32> to vector<64x128xf32>
    %c0_36 = arith.constant 0 : index
    %c1_37 = arith.constant 1 : index
    %c0_38 = arith.constant 0 : index
    %27 = vector.load %arg8[%c0_36, %c1_37, %c0_38] : memref<10x10x128xf32, #tpu.memory_space<vmem>>, vector<8x8x128xf32>
    %28 = vector.shape_cast %27 : vector<8x8x128xf32> to vector<64x128xf32>
    %c0_39 = arith.constant 0 : index
    %c2 = arith.constant 2 : index
    %c0_40 = arith.constant 0 : index
    %29 = vector.load %arg8[%c0_39, %c2, %c0_40] : memref<10x10x128xf32, #tpu.memory_space<vmem>>, vector<8x8x128xf32>
    %30 = vector.shape_cast %29 : vector<8x8x128xf32> to vector<64x128xf32>
    %c1_41 = arith.constant 1 : index
    %c0_42 = arith.constant 0 : index
    %c0_43 = arith.constant 0 : index
    %31 = vector.load %arg8[%c1_41, %c0_42, %c0_43] : memref<10x10x128xf32, #tpu.memory_space<vmem>>, vector<8x8x128xf32>
    %32 = vector.shape_cast %31 : vector<8x8x128xf32> to vector<64x128xf32>
    %c1_44 = arith.constant 1 : index
    %c1_45 = arith.constant 1 : index
    %c0_46 = arith.constant 0 : index
    %33 = vector.load %arg8[%c1_44, %c1_45, %c0_46] : memref<10x10x128xf32, #tpu.memory_space<vmem>>, vector<8x8x128xf32>
    %34 = vector.shape_cast %33 : vector<8x8x128xf32> to vector<64x128xf32>
    %c1_47 = arith.constant 1 : index
    %c2_48 = arith.constant 2 : index
    %c0_49 = arith.constant 0 : index
    %35 = vector.load %arg8[%c1_47, %c2_48, %c0_49] : memref<10x10x128xf32, #tpu.memory_space<vmem>>, vector<8x8x128xf32>
    %36 = vector.shape_cast %35 : vector<8x8x128xf32> to vector<64x128xf32>
    %c2_50 = arith.constant 2 : index
    %c0_51 = arith.constant 0 : index
    %c0_52 = arith.constant 0 : index
    %37 = vector.load %arg8[%c2_50, %c0_51, %c0_52] : memref<10x10x128xf32, #tpu.memory_space<vmem>>, vector<8x8x128xf32>
    %38 = vector.shape_cast %37 : vector<8x8x128xf32> to vector<64x128xf32>
    %c2_53 = arith.constant 2 : index
    %c1_54 = arith.constant 1 : index
    %c0_55 = arith.constant 0 : index
    %39 = vector.load %arg8[%c2_53, %c1_54, %c0_55] : memref<10x10x128xf32, #tpu.memory_space<vmem>>, vector<8x8x128xf32>
    %40 = vector.shape_cast %39 : vector<8x8x128xf32> to vector<64x128xf32>
    %c2_56 = arith.constant 2 : index
    %c2_57 = arith.constant 2 : index
    %c0_58 = arith.constant 0 : index
    %41 = vector.load %arg8[%c2_56, %c2_57, %c0_58] : memref<10x10x128xf32, #tpu.memory_space<vmem>>, vector<8x8x128xf32>
    %42 = vector.shape_cast %41 : vector<8x8x128xf32> to vector<64x128xf32>
    %c1_59 = arith.constant 1 : index
    %c1_60 = arith.constant 1 : index
    %c0_61 = arith.constant 0 : index
    %43 = vector.load %arg7[%c1_59, %c1_60, %c0_61] : memref<9x9x128xf32, #tpu.memory_space<vmem>>, vector<8x8x128xf32>
    %44 = vector.shape_cast %43 : vector<8x8x128xf32> to vector<64x128xf32>
    %45 = tpu.concatenate %26, %28, %30, %32, %34, %36, %38, %40, %42, %44 in 1 : vector<64x128xf32>, vector<64x128xf32>, vector<64x128xf32>, vector<64x128xf32>, vector<64x128xf32>, vector<64x128xf32>, vector<64x128xf32>, vector<64x128xf32>, vector<64x128xf32>, vector<64x128xf32> -> vector<64x1280xf32>
    %c0_62 = arith.constant 0 : index
    %c0_63 = arith.constant 0 : index
    %46 = vector.load %arg4[%c0_62, %c0_63] : memref<1280x128xf32, #tpu.memory_space<vmem>>, vector<1280x128xf32>
    %cst_64 = arith.constant dense<0.000000e+00> : vector<64x128xf32>
    %47 = tpu.matmul %45, %46, %cst_64 {dimension_numbers = #tpu.dot_dimension_numbers<[1], [0], [0], [1], [0, 0, 1, 1], [], []>} : vector<64x1280xf32>, vector<1280x128xf32>, vector<64x128xf32> -> vector<64x128xf32>
    %c0_65 = arith.constant 0 : index
    %c0_66 = arith.constant 0 : index
    %48 = vector.load %arg5[%c0_65, %c0_66] : memref<1x128xf32, #tpu.memory_space<vmem>>, vector<1x128xf32>
    %49 = vector.broadcast %48 : vector<1x128xf32> to vector<64x128xf32>
    %50 = arith.addf %47, %49 : vector<64x128xf32>
    %cst_67 = arith.constant 0.000000e+00 : f32
    %51 = vector.broadcast %cst_67 : f32 to vector<64x128xf32>
    %52 = arith.maximumf %50, %51 : vector<64x128xf32>
    %53 = vector.shape_cast %52 : vector<64x128xf32> to vector<8x8x128xf32>
    %c0_68 = arith.constant 0 : index
    %c0_69 = arith.constant 0 : index
    %c0_70 = arith.constant 0 : index
    %c0_71 = arith.constant 0 : index
    %54 = vector.load %arg6[%c0_68, %c0_69, %c0_70, %c0_71] : memref<1x8x8x128xf32, #tpu.memory_space<vmem>>, vector<1x8x8x128xf32>
    %55 = vector.shape_cast %54 : vector<1x8x8x128xf32> to vector<8x8x128xf32>
    %56 = vector.shape_cast %53 : vector<8x8x128xf32> to vector<1x8x8x128xf32>
    tpu.vector_store %arg6[%c0_68, %c0_69, %c0_70, %c0_71], %56 {strides = array<i32>} : memref<1x8x8x128xf32, #tpu.memory_space<vmem>>, vector<1x8x8x128xf32>,
    return
  }
  func.func @transform_0(%arg0: i32) -> (i32, i32, i32, i32) {
    %c0_i32 = arith.constant 0 : i32
    %c0_i32_0 = arith.constant 0 : i32
    %c0_i32_1 = arith.constant 0 : i32
    %c0_i32_2 = arith.constant 0 : i32
    return %arg0, %c0_i32, %c0_i32_0, %c0_i32_1 : i32, i32, i32, i32
  }
  func.func @transform_1(%arg0: i32) -> (i32, i32) {
    %c0_i32 = arith.constant 0 : i32
    %c0_i32_0 = arith.constant 0 : i32
    %c0_i32_1 = arith.constant 0 : i32
    return %c0_i32, %c0_i32_0 : i32, i32
  }
  func.func @transform_2(%arg0: i32) -> (i32, i32) {
    %c0_i32 = arith.constant 0 : i32
    %c0_i32_0 = arith.constant 0 : i32
    %c0_i32_1 = arith.constant 0 : i32
    return %c0_i32, %c0_i32_0 : i32, i32
  }
  func.func @transform_3(%arg0: i32) -> (i32, i32) {
    %c0_i32 = arith.constant 0 : i32
    %c0_i32_0 = arith.constant 0 : i32
    %c0_i32_1 = arith.constant 0 : i32
    return %c0_i32, %c0_i32_0 : i32, i32
  }
  func.func @transform_4(%arg0: i32) -> (i32, i32) {
    %c0_i32 = arith.constant 0 : i32
    %c0_i32_0 = arith.constant 0 : i32
    %c0_i32_1 = arith.constant 0 : i32
    return %c0_i32, %c0_i32_0 : i32, i32
  }
  func.func @transform_5(%arg0: i32) -> (i32, i32, i32, i32) {
    %c0_i32 = arith.constant 0 : i32
    %c0_i32_0 = arith.constant 0 : i32
    %c0_i32_1 = arith.constant 0 : i32
    %c0_i32_2 = arith.constant 0 : i32
    return %arg0, %c0_i32, %c0_i32_0, %c0_i32_1 : i32, i32, i32, i32
  }
}

</mosaic_0001>

<llo_original>
// kernel: tpu_custom_call.1
$region0: #{tpu_custom_call.1}
  #allocation0 [shape = 'u32[]', space=smem, size = 0x4, offset = 0x4, fixed_abs, tag = 'smem constant byte address 0x4 - core index']
  #allocation1 [shape = 'u32[72,128]{1,0:T(1,128)}', space=vmem, size = 0x9000, scoped, tag = 'internal scratch']
  #allocation2 [shape = 'f32[9,9,128]{2,1,0:T(8,128)}', space=vmem, size = 0x12000, scoped, tag = 'scratch operand']
  #allocation3 [shape = 'f32[10,10,128]{2,1,0:T(8,128)}', space=vmem, size = 0x14000, scoped, tag = 'scratch operand']
  %s0 = inlined_call_operand.hbm [shape: f32[2,8,8,16], index: 0, kind: input, shape index: {}]
  %s1 = inlined_call_operand.hbm [shape: f32[512,128], index: 1, kind: input, shape index: {}]
  %s2 = inlined_call_operand.vmem [shape: f32[1,128], index: 2, kind: input, shape index: {}]
  %s3 = inlined_call_operand.hbm [shape: f32[1280,128], index: 3, kind: input, shape index: {}]
  %s4 = inlined_call_operand.vmem [shape: f32[1,128], index: 4, kind: input, shape index: {}]
  %s5 = inlined_call_operand.hbm [shape: f32[2,8,8,128], index: 5, kind: output, shape index: {}]
  %s6 = sld [smem:[#allocation0]]
  $region65: #{tpu_custom_call.1} parent=0
    _
  %s8 = ssub.s32 1, %s6
  %s9 = scalar_select 0, %s8, %s6
  $region1: #{tpu_custom_call.1} parent=0
    #allocation4 [shape = 'u8[65536]{0}', space=vmem, size = 0x10000, scoped, tag = 'input window, operand 0']
    #allocation5 [shape = 's32[2]{0}', space=sflag, size = 0x8, scoped, tag = 'scoped memory for tpu_custom_call.1']
    #allocation6 [shape = 's32[2]{0}', space=sflag, size = 0x8, scoped, tag = 'scoped memory for tpu_custom_call.1']
    #allocation7 [shape = 'u8[262144]{0}', space=vmem, size = 0x40000, scoped, tag = 'input window, operand 1, single buffered']
    #allocation8 [shape = 's32[1]{0}', space=sflag, size = 0x4, scoped, tag = 'scoped memory for tpu_custom_call.1']
    #allocation9 [shape = 'u8[655360]{0}', space=vmem, size = 0xa0000, scoped, tag = 'input window, operand 3, single buffered']
    #allocation10 [shape = 'u8[65536]{0}', space=vmem, size = 0x10000, scoped, tag = 'output window, operand 0']
    %10 = vsyncpa [#allocation5], 0
    %s11 = scalar_lea.sflag [#allocation5], 1
    %12 = vsyncpa %s11, 0
    %13 = vsyncpa [#allocation8], 0
    %14 = vsyncpa [#allocation6], 0
    %s15 = scalar_lea.sflag [#allocation6], 1
    %16 = vsyncpa %s15, 0
    loop: start=0, step=1, limit=4
    $region2: #{tpu_custom_call.1} parent=1 // loop_pre_header
      _
    $region3: #{tpu_custom_call.1} parent=1 // loop_header
      %s18 = sphi 0, %s22
      %p19 = scmp.ge.s32.totalorder %s18, 4
      %s28 = sphi 0, %s30
      %s31 = sphi 0, %s28
      %s32 = sphi 0, %s31
      %s48 = sphi 0, %s32
      %s52 = sphi 0, %s52
      %s54 = sphi 0, %s52
      %s55 = sphi 0, %s54
      %s69 = sphi 0, %s55
      %s73 = sphi 0, %s73
      %s75 = sphi 0, %s73
      %s76 = sphi 0, %s75
      %s90 = sphi 0, %s76
      %s94 = sphi 0, %s94
      %s96 = sphi 0, %s94
      %s97 = sphi 0, %s96
      %s111 = sphi 0, %s97
      %s115 = sphi 0, %s115
      %s117 = sphi 0, %s115
      %s118 = sphi 0, %s117
      %s132 = sphi 0, %s118
      %s138 = sphi 0, %s140
      %s141 = sphi 0, %s138
      %s142 = sphi 0, %s141
      %s158 = sphi 0, %s142
    $region4: #{tpu_custom_call.1} parent=1 // loop_header_branch
      %21 = sbr.rel (%p19) target = $region8
    $region5: #{tpu_custom_call.1} parent=1 // loop_body
      %s23 = ssub.s32 %s18, 1
      %s24 = ssub.s32 %s18, 2
      %s25 = sadd.s32 %s18, 1
      %s26 = ssub.s32 %s18, %s25
      %p27 = scmp.eq.s32.totalorder %s26, 0
      %s29 = sadd.s32 %s28, 1
      %s30 = scalar_select %p27, %s28, %s29
      %p33 = pneg %p27
      %p34 = scmp.eq.s32.totalorder %s18, 1
      %p35 = por %p33, %p34
      %p36 = scmp.ne.s32.totalorder %s28, %s31
      %p37 = scmp.eq.s32.totalorder %s18, 0
      %p38 = por %p36, %p37
      %p39 = scmp.ne.s32.totalorder %s28, %s31
      %p40 = scmp.eq.s32.totalorder %s23, 1
      %p41 = por %p39, %p40
      %p42 = scmp.ne.s32.totalorder %s31, %s32
      %p43 = scmp.eq.s32.totalorder %s23, 0
      %p44 = por %p42, %p43
      %p45 = scmp.ne.s32.totalorder %s31, %s32
      %p46 = scmp.eq.s32.totalorder %s24, 1
      %p47 = por %p45, %p46
      %p49 = scmp.ne.s32.totalorder %s32, %s48
      %p50 = scmp.eq.s32.totalorder %s24, 0
      %p51 = por %p49, %p50
      %s53 = sadd.s32 %s52, 1
      %p56 = scmp.eq.s32.totalorder %s18, 1
      %p57 = scmp.ne.s32.totalorder %s52, %s54
      %p58 = scmp.eq.s32.totalorder %s18, 0
      %p59 = por %p57, %p58
      %p60 = scmp.ne.s32.totalorder %s52, %s54
      %p61 = scmp.eq.s32.totalorder %s23, 1
      %p62 = por %p60, %p61
      %p63 = scmp.ne.s32.totalorder %s54, %s55
      %p64 = scmp.eq.s32.totalorder %s23, 0
      %p65 = por %p63, %p64
      %p66 = scmp.ne.s32.totalorder %s54, %s55
      %p67 = scmp.eq.s32.totalorder %s24, 1
      %p68 = por %p66, %p67
      %p70 = scmp.ne.s32.totalorder %s55, %s69
      %p71 = scmp.eq.s32.totalorder %s24, 0
      %p72 = por %p70, %p71
      %s74 = sadd.s32 %s73, 1
      %p77 = scmp.eq.s32.totalorder %s18, 1
      %p78 = scmp.ne.s32.totalorder %s73, %s75
      %p79 = scmp.eq.s32.totalorder %s18, 0
      %p80 = por %p78, %p79
      %p81 = scmp.ne.s32.totalorder %s73, %s75
      %p82 = scmp.eq.s32.totalorder %s23, 1
      %p83 = por %p81, %p82
      %p84 = scmp.ne.s32.totalorder %s75, %s76
      %p85 = scmp.eq.s32.totalorder %s23, 0
      %p86 = por %p84, %p85
      %p87 = scmp.ne.s32.totalorder %s75, %s76
      %p88 = scmp.eq.s32.totalorder %s24, 1
      %p89 = por %p87, %p88
      %p91 = scmp.ne.s32.totalorder %s76, %s90
      %p92 = scmp.eq.s32.totalorder %s24, 0
      %p93 = por %p91, %p92
      %s95 = sadd.s32 %s94, 1
      %p98 = scmp.eq.s32.totalorder %s18, 1
      %p99 = scmp.ne.s32.totalorder %s94, %s96
      %p100 = scmp.eq.s32.totalorder %s18, 0
      %p101 = por %p99, %p100
      %p102 = scmp.ne.s32.totalorder %s94, %s96
      %p103 = scmp.eq.s32.totalorder %s23, 1
      %p104 = por %p102, %p103
      %p105 = scmp.ne.s32.totalorder %s96, %s97
      %p106 = scmp.eq.s32.totalorder %s23, 0
      %p107 = por %p105, %p106
      %p108 = scmp.ne.s32.totalorder %s96, %s97
      %p109 = scmp.eq.s32.totalorder %s24, 1
      %p110 = por %p108, %p109
      %p112 = scmp.ne.s32.totalorder %s97, %s111
      %p113 = scmp.eq.s32.totalorder %s24, 0
      %p114 = por %p112, %p113
      %s116 = sadd.s32 %s115, 1
      %p119 = scmp.eq.s32.totalorder %s18, 1
      %p120 = scmp.ne.s32.totalorder %s115, %s117
      %p121 = scmp.eq.s32.totalorder %s18, 0
      %p122 = por %p120, %p121
      %p123 = scmp.ne.s32.totalorder %s115, %s117
      %p124 = scmp.eq.s32.totalorder %s23, 1
      %p125 = por %p123, %p124
      %p126 = scmp.ne.s32.totalorder %s117, %s118
      %p127 = scmp.eq.s32.totalorder %s23, 0
      %p128 = por %p126, %p127
      %p129 = scmp.ne.s32.totalorder %s117, %s118
      %p130 = scmp.eq.s32.totalorder %s24, 1
      %p131 = por %p129, %p130
      %p133 = scmp.ne.s32.totalorder %s118, %s132
      %p134 = scmp.eq.s32.totalorder %s24, 0
      %p135 = por %p133, %p134
      %s136 = ssub.s32 %s18, %s25
      %p137 = scmp.eq.s32.totalorder %s136, 0
      %s139 = sadd.s32 %s138, 1
      %s140 = scalar_select %p137, %s138, %s139
      %p143 = pneg %p137
      %p144 = scmp.eq.s32.totalorder %s18, 1
      %p145 = por %p143, %p144
      %p146 = scmp.ne.s32.totalorder %s138, %s141
      %p147 = scmp.eq.s32.totalorder %s18, 0
      %p148 = por %p146, %p147
      %p149 = scmp.ne.s32.totalorder %s138, %s141
      %p150 = scmp.eq.s32.totalorder %s23, 1
      %p151 = por %p149, %p150
      %p152 = scmp.ne.s32.totalorder %s141, %s142
      %p153 = scmp.eq.s32.totalorder %s23, 0
      %p154 = por %p152, %p153
      %p155 = scmp.ne.s32.totalorder %s141, %s142
      %p156 = scmp.eq.s32.totalorder %s24, 1
      %p157 = por %p155, %p156
      %p159 = scmp.ne.s32.totalorder %s142, %s158
      %p160 = scmp.eq.s32.totalorder %s24, 0
      %p161 = por %p159, %p160
      %p162 = scmp.le.s32.totalorder 1, %s18
      %p163 = scmp.lt.s32.totalorder %s18, 3
      %p164 = pnand %p162, %p163
      %p165 = pneg %p164
      // Predicated region
      $region9: #{tpu_custom_call.1} parent=5 // pred_check
        _
      $region10: #{tpu_custom_call.1} parent=5 // pred_check_branch
        %167 = sbr.rel (%p164) target = $region12
      $region11: #{tpu_custom_call.1} parent=5 // pred_region
        %s168 = ssub.s32 %s18, 1
        // Predicated region
        $region13: #{tpu_custom_call.1} parent=11 // pred_check
          %p169 = pneg %p65
        $region14: #{tpu_custom_call.1} parent=11 // pred_check_branch
          %171 = sbr.rel (%p169) target = $region16
        $region15: #{tpu_custom_call.1} parent=11 // pred_region
          %173 = vsyncadd [#allocation8], 0
          %s174 = sshll.u32 %s1, 4
          %s175 = int_to_ptr.hbm [resolvable:$true] %s174
          %s176 = sshll.u32 [#allocation7], 4
          %s177 = int_to_ptr.vmem [resolvable:$true] %s176
          %182 = dma.hbm_to_vmem [thread:$0]  %s175, 8192, %s177, [#allocation8], 128, 128, 8
        $region16: #{tpu_custom_call.1} parent=11 // pred_fallthru
          _
        // Predicated region
        $region17: #{tpu_custom_call.1} parent=11 // pred_check
          %p183 = pneg %p86
        $region18: #{tpu_custom_call.1} parent=11 // pred_check_branch
          %185 = sbr.rel (%p183) target = $region20
        $region19: #{tpu_custom_call.1} parent=11 // pred_region
          _
        $region20: #{tpu_custom_call.1} parent=11 // pred_fallthru
          _
        // Predicated region
        $region21: #{tpu_custom_call.1} parent=11 // pred_check
          %p186 = pneg %p107
        $region22: #{tpu_custom_call.1} parent=11 // pred_check_branch
          %188 = sbr.rel (%p186) target = $region24
        $region23: #{tpu_custom_call.1} parent=11 // pred_region
          %190 = vsyncadd [#allocation8], 0
          %s191 = sshll.u32 %s3, 4
          %s192 = int_to_ptr.hbm [resolvable:$true] %s191
          %s193 = sshll.u32 [#allocation9], 4
          %s194 = int_to_ptr.vmem [resolvable:$true] %s193
          %199 = dma.hbm_to_vmem [thread:$0]  %s192, 20480, %s194, [#allocation8], 128, 128, 8
        $region24: #{tpu_custom_call.1} parent=11 // pred_fallthru
          _
        // Predicated region
        $region25: #{tpu_custom_call.1} parent=11 // pred_check
          %p200 = pneg %p128
        $region26: #{tpu_custom_call.1} parent=11 // pred_check_branch
          %202 = sbr.rel (%p200) target = $region28
        $region27: #{tpu_custom_call.1} parent=11 // pred_region
          _
        $region28: #{tpu_custom_call.1} parent=11 // pred_fallthru
          _
      $region12: #{tpu_custom_call.1} parent=5 // pred_fallthru
        _
      %p203 = scmp.lt.s32.totalorder %s18, 2
      // Predicated region
      $region29: #{tpu_custom_call.1} parent=5 // pred_check
        %p204 = pneg %p203
      $region30: #{tpu_custom_call.1} parent=5 // pred_check_branch
        %206 = sbr.rel (%p204) target = $region32
      $region31: #{tpu_custom_call.1} parent=5 // pred_region
        // Predicated region
        $region33: #{tpu_custom_call.1} parent=31 // pred_check
          %p207 = pneg %p38
        $region34: #{tpu_custom_call.1} parent=31 // pred_check_branch
          %209 = sbr.rel (%p207) target = $region36
        $region35: #{tpu_custom_call.1} parent=31 // pred_region
          %s210 = sand.u32 %s28, 1
          %s211 = scalar_lea.sflag [#allocation5], %s210
          %s212 = sand.u32 %s28, 1
          %s213 = smul.addr %s212, 64
          %s214 = scalar_lea.vmem [#allocation4], %s213
          %216 = vsyncadd %s211, 0
          %s217 = smul.addr %s18, 8
          %s218 = smul.addr %s217, 8
          %s219 = scalar_lea.hbm %s0, %s218
          %s220 = sshll.u32 %s219, 4
          %s221 = int_to_ptr.hbm [resolvable:$true] %s220
          %s222 = sshll.u32 %s214, 4
          %s223 = int_to_ptr.vmem [resolvable:$true] %s222
          %228 = dma.hbm_to_vmem [thread:$0]  %s221, 1024, %s223, %s211, 128, 128, 8
        $region36: #{tpu_custom_call.1} parent=31 // pred_fallthru
          _
      $region32: #{tpu_custom_call.1} parent=5 // pred_fallthru
        _
      %p229 = scmp.le.s32.totalorder 1, %s18
      %p230 = scmp.lt.s32.totalorder %s18, 3
      %p231 = pnand %p229, %p230
      %p232 = pneg %p231
      // Predicated region
      $region37: #{tpu_custom_call.1} parent=5 // pred_check
        _
      $region38: #{tpu_custom_call.1} parent=5 // pred_check_branch
        %234 = sbr.rel (%p231) target = $region40
      $region39: #{tpu_custom_call.1} parent=5 // pred_region
        %s235 = ssub.s32 %s18, 1
        %s236 = sand.u32 %s31, 1
        %s237 = scalar_lea.sflag [#allocation5], %s236
        %s238 = sand.u32 %s31, 1
        %s239 = smul.addr %s238, 64
        %s240 = scalar_lea.vmem [#allocation4], %s239
        // Predicated region
        $region41: #{tpu_custom_call.1} parent=39 // pred_check
          %p241 = pneg %p44
        $region42: #{tpu_custom_call.1} parent=39 // pred_check_branch
          %243 = sbr.rel (%p241) target = $region44
        $region43: #{tpu_custom_call.1} parent=39 // pred_region
          %245 = dma.done %s237, 1024
        $region44: #{tpu_custom_call.1} parent=39 // pred_fallthru
          _
        // Predicated region
        $region45: #{tpu_custom_call.1} parent=39 // pred_check
          %p246 = pneg %p65
        $region46: #{tpu_custom_call.1} parent=39 // pred_check_branch
          %248 = sbr.rel (%p246) target = $region48
        $region47: #{tpu_custom_call.1} parent=39 // pred_region
          %250 = dma.done [#allocation8], 8192
        $region48: #{tpu_custom_call.1} parent=39 // pred_fallthru
          _
        // Predicated region
        $region49: #{tpu_custom_call.1} parent=39 // pred_check
          %p251 = pneg %p107
        $region50: #{tpu_custom_call.1} parent=39 // pred_check_branch
          %253 = sbr.rel (%p251) target = $region52
        $region51: #{tpu_custom_call.1} parent=39 // pred_region
          %255 = dma.done [#allocation8], 20480
        $region52: #{tpu_custom_call.1} parent=39 // pred_fallthru
          _
        %s256 = sand.u32 %s31, 1
        %s257 = scalar_lea.sflag [#allocation5], %s256
        %s258 = sand.u32 %s31, 1
        %s259 = smul.addr %s258, 64
        %s260 = scalar_lea.vmem [#allocation4], %s259
        %p261 = pneg %p44
        %p262 = pneg %p41
        %p263 = pneg %p65
        %p264 = pneg %p62
        %p265 = pneg %p86
        %p266 = pneg %p83
        %p267 = pneg %p107
        %p268 = pneg %p104
        %p269 = pneg %p128
        %p270 = pneg %p125
        %p271 = pneg %p154
        %p272 = pneg %p151
        %s273 = sand.u32 %s141, 1
        %s274 = scalar_lea.sflag [#allocation6], %s273
        %s275 = sand.u32 %s141, 1
        %s276 = smul.addr %s275, 64
        %s277 = scalar_lea.vmem [#allocation10], %s276
        %278 = vst [vmem:[#allocation2] sm:$0xff] 0.0
        %279 = vst [vmem:[#allocation2 + $0x8] sm:$0x1] 0.0
        %280 = vst [vmem:[#allocation2 + $0x10] sm:$0xff] 0.0
        %281 = vst [vmem:[#allocation2 + $0x18] sm:$0x1] 0.0
        %282 = vst [vmem:[#allocation2 + $0x20] sm:$0xff] 0.0
        %283 = vst [vmem:[#allocation2 + $0x28] sm:$0x1] 0.0
        %284 = vst [vmem:[#allocation2 + $0x30] sm:$0xff] 0.0
        %285 = vst [vmem:[#allocation2 + $0x38] sm:$0x1] 0.0
        %286 = vst [vmem:[#allocation2 + $0x40] sm:$0xff] 0.0
        %287 = vst [vmem:[#allocation2 + $0x48] sm:$0x1] 0.0
        %288 = vst [vmem:[#allocation2 + $0x50] sm:$0xff] 0.0
        %289 = vst [vmem:[#allocation2 + $0x58] sm:$0x1] 0.0
        %290 = vst [vmem:[#allocation2 + $0x60] sm:$0xff] 0.0
        %291 = vst [vmem:[#allocation2 + $0x68] sm:$0x1] 0.0
        %292 = vst [vmem:[#allocation2 + $0x70] sm:$0xff] 0.0
        %293 = vst [vmem:[#allocation2 + $0x78] sm:$0x1] 0.0
        %294 = vst [vmem:[#allocation2 + $0x80] sm:$0xff] 0.0
        %295 = vst [vmem:[#allocation2 + $0x88] sm:$0x1] 0.0
        %v296 = vld [vmem:[%s240] sm:$0xff]
        %v297 = vld [vmem:[%s240 + $0x8] sm:$0xff]
        %v298 = vld [vmem:[%s240 + $0x10] sm:$0xff]
        %v299 = vld [vmem:[%s240 + $0x18] sm:$0xff]
        %v300 = vld [vmem:[%s240 + $0x20] sm:$0xff]
        %v301 = vld [vmem:[%s240 + $0x28] sm:$0xff]
        %v302 = vld [vmem:[%s240 + $0x30] sm:$0xff]
        %v303 = vld [vmem:[%s240 + $0x38] sm:$0xff]
        %s304 = scalar_lea.vmem [#allocation2], 16
        %vm305 = vcmask 130048
        %306 = vst.msk [vmem:[%s304 + $0x1] sm:$0xff] %vm305, %v296
        %307 = vst.msk [vmem:[%s304 + $0x11] sm:$0xff] %vm305, %v297
        %308 = vst.msk [vmem:[%s304 + $0x21] sm:$0xff] %vm305, %v298
        %309 = vst.msk [vmem:[%s304 + $0x31] sm:$0xff] %vm305, %v299
        %310 = vst.msk [vmem:[%s304 + $0x41] sm:$0xff] %vm305, %v300
        %311 = vst.msk [vmem:[%s304 + $0x51] sm:$0xff] %vm305, %v301
        %312 = vst.msk [vmem:[%s304 + $0x61] sm:$0xff] %vm305, %v302
        %313 = vst.msk [vmem:[%s304 + $0x71] sm:$0xff] %vm305, %v303
        %v314 = vld [vmem:[#allocation2] sm:$0xff]
        %v315 = vld [vmem:[#allocation2 + $0x10] sm:$0xff]
        %v316 = vld [vmem:[#allocation2 + $0x20] sm:$0xff]
        %v317 = vld [vmem:[#allocation2 + $0x30] sm:$0xff]
        %v318 = vld [vmem:[#allocation2 + $0x40] sm:$0xff]
        %v319 = vld [vmem:[#allocation2 + $0x50] sm:$0xff]
        %v320 = vld [vmem:[#allocation2 + $0x60] sm:$0xff]
        %v321 = vld [vmem:[#allocation2 + $0x70] sm:$0xff]
        %v322 = vld [vmem:[#allocation2 + $0x1] sm:$0xff]
        %v323 = vld [vmem:[#allocation2 + $0x11] sm:$0xff]
        %v324 = vld [vmem:[#allocation2 + $0x21] sm:$0xff]
        %v325 = vld [vmem:[#allocation2 + $0x31] sm:$0xff]
        %v326 = vld [vmem:[#allocation2 + $0x41] sm:$0xff]
        %v327 = vld [vmem:[#allocation2 + $0x51] sm:$0xff]
        %v328 = vld [vmem:[#allocation2 + $0x61] sm:$0xff]
        %v329 = vld [vmem:[#allocation2 + $0x71] sm:$0xff]
        %v330 = vld [vmem:[%s304] sm:$0xff]
        %v331 = vld [vmem:[%s304 + $0x10] sm:$0xff]
        %v332 = vld [vmem:[%s304 + $0x20] sm:$0xff]
        %v333 = vld [vmem:[%s304 + $0x30] sm:$0xff]
        %v334 = vld [vmem:[%s304 + $0x40] sm:$0xff]
        %v335 = vld [vmem:[%s304 + $0x50] sm:$0xff]
        %v336 = vld [vmem:[%s304 + $0x60] sm:$0xff]
        %v337 = vld [vmem:[%s304 + $0x70] sm:$0xff]
        %v338 = vld [vmem:[%s304 + $0x1] sm:$0xff]
        %v339 = vld [vmem:[%s304 + $0x11] sm:$0xff]
        %v340 = vld [vmem:[%s304 + $0x21] sm:$0xff]
        %v341 = vld [vmem:[%s304 + $0x31] sm:$0xff]
        %v342 = vld [vmem:[%s304 + $0x41] sm:$0xff]
        %v343 = vld [vmem:[%s304 + $0x51] sm:$0xff]
        %v344 = vld [vmem:[%s304 + $0x61] sm:$0xff]
        %v345 = vld [vmem:[%s304 + $0x71] sm:$0xff]
        %v346 = vld [vmem:[#allocation7] sm:$0xff]
        %v347 = vld [vmem:[#allocation7 + $0x8] sm:$0xff]
        %v348 = vld [vmem:[#allocation7 + $0x10] sm:$0xff]
        %v349 = vld [vmem:[#allocation7 + $0x18] sm:$0xff]
        %v350 = vld [vmem:[#allocation7 + $0x20] sm:$0xff]
        %v351 = vld [vmem:[#allocation7 + $0x28] sm:$0xff]
        %v352 = vld [vmem:[#allocation7 + $0x30] sm:$0xff]
        %v353 = vld [vmem:[#allocation7 + $0x38] sm:$0xff]
        %v354 = vld [vmem:[#allocation7 + $0x40] sm:$0xff]
        %v355 = vld [vmem:[#allocation7 + $0x48] sm:$0xff]
        %v356 = vld [vmem:[#allocation7 + $0x50] sm:$0xff]
        %v357 = vld [vmem:[#allocation7 + $0x58] sm:$0xff]
        %v358 = vld [vmem:[#allocation7 + $0x60] sm:$0xff]
        %v359 = vld [vmem:[#allocation7 + $0x68] sm:$0xff]
        %v360 = vld [vmem:[#allocation7 + $0x70] sm:$0xff]
        %v361 = vld [vmem:[#allocation7 + $0x78] sm:$0xff]
        %v362 = vld [vmem:[#allocation7 + $0x80] sm:$0xff]
        %v363 = vld [vmem:[#allocation7 + $0x88] sm:$0xff]
        %v364 = vld [vmem:[#allocation7 + $0x90] sm:$0xff]
        %v365 = vld [vmem:[#allocation7 + $0x98] sm:$0xff]
        %v366 = vld [vmem:[#allocation7 + $0xa0] sm:$0xff]
        %v367 = vld [vmem:[#allocation7 + $0xa8] sm:$0xff]
        %v368 = vld [vmem:[#allocation7 + $0xb0] sm:$0xff]
        %v369 = vld [vmem:[#allocation7 + $0xb8] sm:$0xff]
        %v370 = vld [vmem:[#allocation7 + $0xc0] sm:$0xff]
        %v371 = vld [vmem:[#allocation7 + $0xc8] sm:$0xff]
        %v372 = vld [vmem:[#allocation7 + $0xd0] sm:$0xff]
        %v373 = vld [vmem:[#allocation7 + $0xd8] sm:$0xff]
        %v374 = vld [vmem:[#allocation7 + $0xe0] sm:$0xff]
        %v375 = vld [vmem:[#allocation7 + $0xe8] sm:$0xff]
        %v376 = vld [vmem:[#allocation7 + $0xf0] sm:$0xff]
        %v377 = vld [vmem:[#allocation7 + $0xf8] sm:$0xff]
        %v378 = vld [vmem:[#allocation7 + $0x100] sm:$0xff]
        %v379 = vld [vmem:[#allocation7 + $0x108] sm:$0xff]
        %v380 = vld [vmem:[#allocation7 + $0x110] sm:$0xff]
        %v381 = vld [vmem:[#allocation7 + $0x118] sm:$0xff]
        %v382 = vld [vmem:[#allocation7 + $0x120] sm:$0xff]
        %v383 = vld [vmem:[#allocation7 + $0x128] sm:$0xff]
        %v384 = vld [vmem:[#allocation7 + $0x130] sm:$0xff]
        %v385 = vld [vmem:[#allocation7 + $0x138] sm:$0xff]
        %v386 = vld [vmem:[#allocation7 + $0x140] sm:$0xff]
        %v387 = vld [vmem:[#allocation7 + $0x148] sm:$0xff]
        %v388 = vld [vmem:[#allocation7 + $0x150] sm:$0xff]
        %v389 = vld [vmem:[#allocation7 + $0x158] sm:$0xff]
        %v390 = vld [vmem:[#allocation7 + $0x160] sm:$0xff]
        %v391 = vld [vmem:[#allocation7 + $0x168] sm:$0xff]
        %v392 = vld [vmem:[#allocation7 + $0x170] sm:$0xff]
        %v393 = vld [vmem:[#allocation7 + $0x178] sm:$0xff]
        %v394 = vld [vmem:[#allocation7 + $0x180] sm:$0xff]
        %v395 = vld [vmem:[#allocation7 + $0x188] sm:$0xff]
        %v396 = vld [vmem:[#allocation7 + $0x190] sm:$0xff]
        %v397 = vld [vmem:[#allocation7 + $0x198] sm:$0xff]
        %v398 = vld [vmem:[#allocation7 + $0x1a0] sm:$0xff]
        %v399 = vld [vmem:[#allocation7 + $0x1a8] sm:$0xff]
        %v400 = vld [vmem:[#allocation7 + $0x1b0] sm:$0xff]
        %v401 = vld [vmem:[#allocation7 + $0x1b8] sm:$0xff]
        %v402 = vld [vmem:[#allocation7 + $0x1c0] sm:$0xff]
        %v403 = vld [vmem:[#allocation7 + $0x1c8] sm:$0xff]
        %v404 = vld [vmem:[#allocation7 + $0x1d0] sm:$0xff]
        %v405 = vld [vmem:[#allocation7 + $0x1d8] sm:$0xff]
        %v406 = vld [vmem:[#allocation7 + $0x1e0] sm:$0xff]
        %v407 = vld [vmem:[#allocation7 + $0x1e8] sm:$0xff]
        %v408 = vld [vmem:[#allocation7 + $0x1f0] sm:$0xff]
        %v409 = vld [vmem:[#allocation7 + $0x1f8] sm:$0xff]
        %v410 = vld [vmem:[%s2] sm:$0x1]
        %v412 = vperm.slane %v410, 0
        %414 = vmatpush.msra.mxu0 %v361
        %415 = vmatpush.msra.mxu0 %v360
        %416 = vmatpush.msra.mxu0 %v359
        %417 = vmatpush.msra.mxu0 %v358
        %418 = vmatpush.msra.mxu0 %v357
        %419 = vmatpush.msra.mxu0 %v356
        %420 = vmatpush.msra.mxu0 %v355
        %421 = vmatpush.msra.mxu0 %v354
        %422 = vmatpush.msra.mxu0 %v353
        %423 = vmatpush.msra.mxu0 %v352
        %424 = vmatpush.msra.mxu0 %v351
        %425 = vmatpush.msra.mxu0 %v350
        %426 = vmatpush.msra.mxu0 %v349
        %427 = vmatpush.msra.mxu0 %v348
        %428 = vmatpush.msra.mxu0 %v347
        %429 = vmatpush.msra.mxu0 %v346
        %430 = vmatmul.f32.gmra.mxu0 %v314
        %v431 = vpop.f32.mrf.mxu0
        %v432 = vadd.f32 %v412, %v431
        %433 = vmatmul.f32.gmra.mxu0 %v315
        %v434 = vpop.f32.mrf.mxu0
        %v435 = vadd.f32 %v412, %v434
        %436 = vmatmul.f32.gmra.mxu0 %v316
        %v437 = vpop.f32.mrf.mxu0
        %v438 = vadd.f32 %v412, %v437
        %439 = vmatmul.f32.gmra.mxu0 %v317
        %v440 = vpop.f32.mrf.mxu0
        %v441 = vadd.f32 %v412, %v440
        %442 = vmatmul.f32.gmra.mxu0 %v318
        %v443 = vpop.f32.mrf.mxu0
        %v444 = vadd.f32 %v412, %v443
        %445 = vmatmul.f32.gmra.mxu0 %v319
        %v446 = vpop.f32.mrf.mxu0
        %v447 = vadd.f32 %v412, %v446
        %448 = vmatmul.f32.gmra.mxu0 %v320
        %v449 = vpop.f32.mrf.mxu0
        %v450 = vadd.f32 %v412, %v449
        %451 = vmatmul.f32.gmra.mxu0 %v321
        %v452 = vpop.f32.mrf.mxu0
        %v453 = vadd.f32 %v412, %v452
        %454 = vdwg.mxu0
        %455 = vmatpush.msra.mxu0 %v377
        %456 = vmatpush.msra.mxu0 %v376
        %457 = vmatpush.msra.mxu0 %v375
        %458 = vmatpush.msra.mxu0 %v374
        %459 = vmatpush.msra.mxu0 %v373
        %460 = vmatpush.msra.mxu0 %v372
        %461 = vmatpush.msra.mxu0 %v371
        %462 = vmatpush.msra.mxu0 %v370
        %463 = vmatpush.msra.mxu0 %v369
        %464 = vmatpush.msra.mxu0 %v368
        %465 = vmatpush.msra.mxu0 %v367
        %466 = vmatpush.msra.mxu0 %v366
        %467 = vmatpush.msra.mxu0 %v365
        %468 = vmatpush.msra.mxu0 %v364
        %469 = vmatpush.msra.mxu0 %v363
        %470 = vmatpush.msra.mxu0 %v362
        %471 = vmatmul.f32.gmra.mxu0 %v322
        %v472 = vpop.f32.mrf.mxu0
        %v473 = vadd.f32 %v432, %v472
        %474 = vmatmul.f32.gmra.mxu0 %v323
        %v475 = vpop.f32.mrf.mxu0
        %v476 = vadd.f32 %v435, %v475
        %477 = vmatmul.f32.gmra.mxu0 %v324
        %v478 = vpop.f32.mrf.mxu0
        %v479 = vadd.f32 %v438, %v478
        %480 = vmatmul.f32.gmra.mxu0 %v325
        %v481 = vpop.f32.mrf.mxu0
        %v482 = vadd.f32 %v441, %v481
        %483 = vmatmul.f32.gmra.mxu0 %v326
        %v484 = vpop.f32.mrf.mxu0
        %v485 = vadd.f32 %v444, %v484
        %486 = vmatmul.f32.gmra.mxu0 %v327
        %v487 = vpop.f32.mrf.mxu0
        %v488 = vadd.f32 %v447, %v487
        %489 = vmatmul.f32.gmra.mxu0 %v328
        %v490 = vpop.f32.mrf.mxu0
        %v491 = vadd.f32 %v450, %v490
        %492 = vmatmul.f32.gmra.mxu0 %v329
        %v493 = vpop.f32.mrf.mxu0
        %v494 = vadd.f32 %v453, %v493
        %495 = vdwg.mxu0
        %496 = vmatpush.msra.mxu0 %v393
        %497 = vmatpush.msra.mxu0 %v392
        %498 = vmatpush.msra.mxu0 %v391
        %499 = vmatpush.msra.mxu0 %v390
        %500 = vmatpush.msra.mxu0 %v389
        %501 = vmatpush.msra.mxu0 %v388
        %502 = vmatpush.msra.mxu0 %v387
        %503 = vmatpush.msra.mxu0 %v386
        %504 = vmatpush.msra.mxu0 %v385
        %505 = vmatpush.msra.mxu0 %v384
        %506 = vmatpush.msra.mxu0 %v383
        %507 = vmatpush.msra.mxu0 %v382
        %508 = vmatpush.msra.mxu0 %v381
        %509 = vmatpush.msra.mxu0 %v380
        %510 = vmatpush.msra.mxu0 %v379
        %511 = vmatpush.msra.mxu0 %v378
        %512 = vmatmul.f32.gmra.mxu0 %v330
        %v513 = vpop.f32.mrf.mxu0
        %v514 = vadd.f32 %v473, %v513
        %515 = vmatmul.f32.gmra.mxu0 %v331
        %v516 = vpop.f32.mrf.mxu0
        %v517 = vadd.f32 %v476, %v516
        %518 = vmatmul.f32.gmra.mxu0 %v332
        %v519 = vpop.f32.mrf.mxu0
        %v520 = vadd.f32 %v479, %v519
        %521 = vmatmul.f32.gmra.mxu0 %v333
        %v522 = vpop.f32.mrf.mxu0
        %v523 = vadd.f32 %v482, %v522
        %524 = vmatmul.f32.gmra.mxu0 %v334
        %v525 = vpop.f32.mrf.mxu0
        %v526 = vadd.f32 %v485, %v525
        %527 = vmatmul.f32.gmra.mxu0 %v335
        %v528 = vpop.f32.mrf.mxu0
        %v529 = vadd.f32 %v488, %v528
        %530 = vmatmul.f32.gmra.mxu0 %v336
        %v531 = vpop.f32.mrf.mxu0
        %v532 = vadd.f32 %v491, %v531
        %533 = vmatmul.f32.gmra.mxu0 %v337
        %v534 = vpop.f32.mrf.mxu0
        %v535 = vadd.f32 %v494, %v534
        %536 = vdwg.mxu0
        %537 = vmatpush.msra.mxu0 %v409
        %538 = vmatpush.msra.mxu0 %v408
        %539 = vmatpush.msra.mxu0 %v407
        %540 = vmatpush.msra.mxu0 %v406
        %541 = vmatpush.msra.mxu0 %v405
        %542 = vmatpush.msra.mxu0 %v404
        %543 = vmatpush.msra.mxu0 %v403
        %544 = vmatpush.msra.mxu0 %v402
        %545 = vmatpush.msra.mxu0 %v401
        %546 = vmatpush.msra.mxu0 %v400
        %547 = vmatpush.msra.mxu0 %v399
        %548 = vmatpush.msra.mxu0 %v398
        %549 = vmatpush.msra.mxu0 %v397
        %550 = vmatpush.msra.mxu0 %v396
        %551 = vmatpush.msra.mxu0 %v395
        %552 = vmatpush.msra.mxu0 %v394
        %553 = vmatmul.f32.gmra.mxu0 %v338
        %v554 = vpop.f32.mrf.mxu0
        %v555 = vadd.f32 %v514, %v554
        %556 = vmatmul.f32.gmra.mxu0 %v339
        %v557 = vpop.f32.mrf.mxu0
        %v558 = vadd.f32 %v517, %v557
        %559 = vmatmul.f32.gmra.mxu0 %v340
        %v560 = vpop.f32.mrf.mxu0
        %v561 = vadd.f32 %v520, %v560
        %562 = vmatmul.f32.gmra.mxu0 %v341
        %v563 = vpop.f32.mrf.mxu0
        %v564 = vadd.f32 %v523, %v563
        %565 = vmatmul.f32.gmra.mxu0 %v342
        %v566 = vpop.f32.mrf.mxu0
        %v567 = vadd.f32 %v526, %v566
        %568 = vmatmul.f32.gmra.mxu0 %v343
        %v569 = vpop.f32.mrf.mxu0
        %v570 = vadd.f32 %v529, %v569
        %571 = vmatmul.f32.gmra.mxu0 %v344
        %v572 = vpop.f32.mrf.mxu0
        %v573 = vadd.f32 %v532, %v572
        %574 = vmatmul.f32.gmra.mxu0 %v345
        %v575 = vpop.f32.mrf.mxu0
        %v576 = vadd.f32 %v535, %v575
        %577 = vdwg.mxu0
        %v578 = vmax.f32 %v555, 0.0
        %v579 = vmax.f32 %v558, 0.0
        %v580 = vmax.f32 %v561, 0.0
        %v581 = vmax.f32 %v564, 0.0
        %v582 = vmax.f32 %v567, 0.0
        %v583 = vmax.f32 %v570, 0.0
        %v584 = vmax.f32 %v573, 0.0
        %v585 = vmax.f32 %v576, 0.0
        %586 = vst [vmem:[#allocation3] sm:$0xff] 0.0
        %587 = vst [vmem:[#allocation3 + $0x8] sm:$0x3] 0.0
        %588 = vst [vmem:[#allocation3 + $0x10] sm:$0xff] 0.0
        %589 = vst [vmem:[#allocation3 + $0x18] sm:$0x3] 0.0
        %590 = vst [vmem:[#allocation3 + $0x20] sm:$0xff] 0.0
        %591 = vst [vmem:[#allocation3 + $0x28] sm:$0x3] 0.0
        %592 = vst [vmem:[#allocation3 + $0x30] sm:$0xff] 0.0
        %593 = vst [vmem:[#allocation3 + $0x38] sm:$0x3] 0.0
        %594 = vst [vmem:[#allocation3 + $0x40] sm:$0xff] 0.0
        %595 = vst [vmem:[#allocation3 + $0x48] sm:$0x3] 0.0
        %596 = vst [vmem:[#allocation3 + $0x50] sm:$0xff] 0.0
        %597 = vst [vmem:[#allocation3 + $0x58] sm:$0x3] 0.0
        %598 = vst [vmem:[#allocation3 + $0x60] sm:$0xff] 0.0
        %599 = vst [vmem:[#allocation3 + $0x68] sm:$0x3] 0.0
        %600 = vst [vmem:[#allocation3 + $0x70] sm:$0xff] 0.0
        %601 = vst [vmem:[#allocation3 + $0x78] sm:$0x3] 0.0
        %602 = vst [vmem:[#allocation3 + $0x80] sm:$0xff] 0.0
        %603 = vst [vmem:[#allocation3 + $0x88] sm:$0x3] 0.0
        %604 = vst [vmem:[#allocation3 + $0x90] sm:$0xff] 0.0
        %605 = vst [vmem:[#allocation3 + $0x98] sm:$0x3] 0.0
        %s606 = scalar_lea.vmem [#allocation3], 16
        %607 = vst [vmem:[%s606 + $0x1] sm:$0xff] %v578
        %608 = vst [vmem:[%s606 + $0x11] sm:$0xff] %v579
        %609 = vst [vmem:[%s606 + $0x21] sm:$0xff] %v580
        %610 = vst [vmem:[%s606 + $0x31] sm:$0xff] %v581
        %611 = vst [vmem:[%s606 + $0x41] sm:$0xff] %v582
        %612 = vst [vmem:[%s606 + $0x51] sm:$0xff] %v583
        %613 = vst [vmem:[%s606 + $0x61] sm:$0xff] %v584
        %614 = vst [vmem:[%s606 + $0x71] sm:$0xff] %v585
        %v615 = vld [vmem:[#allocation3] sm:$0xff]
        %v616 = vld [vmem:[#allocation3 + $0x10] sm:$0xff]
        %v617 = vld [vmem:[#allocation3 + $0x20] sm:$0xff]
        %v618 = vld [vmem:[#allocation3 + $0x30] sm:$0xff]
        %v619 = vld [vmem:[#allocation3 + $0x40] sm:$0xff]
        %v620 = vld [vmem:[#allocation3 + $0x50] sm:$0xff]
        %v621 = vld [vmem:[#allocation3 + $0x60] sm:$0xff]
        %v622 = vld [vmem:[#allocation3 + $0x70] sm:$0xff]
        %v623 = vld [vmem:[#allocation3 + $0x1] sm:$0xff]
        %v624 = vld [vmem:[#allocation3 + $0x11] sm:$0xff]
        %v625 = vld [vmem:[#allocation3 + $0x21] sm:$0xff]
        %v626 = vld [vmem:[#allocation3 + $0x31] sm:$0xff]
        %v627 = vld [vmem:[#allocation3 + $0x41] sm:$0xff]
        %v628 = vld [vmem:[#allocation3 + $0x51] sm:$0xff]
        %v629 = vld [vmem:[#allocation3 + $0x61] sm:$0xff]
        %v630 = vld [vmem:[#allocation3 + $0x71] sm:$0xff]
        %v631 = vld [vmem:[#allocation3 + $0x2] sm:$0xff]
        %v632 = vld [vmem:[#allocation3 + $0x12] sm:$0xff]
        %v633 = vld [vmem:[#allocation3 + $0x22] sm:$0xff]
        %v634 = vld [vmem:[#allocation3 + $0x32] sm:$0xff]
        %v635 = vld [vmem:[#allocation3 + $0x42] sm:$0xff]
        %v636 = vld [vmem:[#allocation3 + $0x52] sm:$0xff]
        %v637 = vld [vmem:[#allocation3 + $0x62] sm:$0xff]
        %v638 = vld [vmem:[#allocation3 + $0x72] sm:$0xff]
        %v639 = vld [vmem:[%s606] sm:$0xff]
        %v640 = vld [vmem:[%s606 + $0x10] sm:$0xff]
        %v641 = vld [vmem:[%s606 + $0x20] sm:$0xff]
        %v642 = vld [vmem:[%s606 + $0x30] sm:$0xff]
        %v643 = vld [vmem:[%s606 + $0x40] sm:$0xff]
        %v644 = vld [vmem:[%s606 + $0x50] sm:$0xff]
        %v645 = vld [vmem:[%s606 + $0x60] sm:$0xff]
        %v646 = vld [vmem:[%s606 + $0x70] sm:$0xff]
        %v647 = vld [vmem:[%s606 + $0x1] sm:$0xff]
        %v648 = vld [vmem:[%s606 + $0x11] sm:$0xff]
        %v649 = vld [vmem:[%s606 + $0x21] sm:$0xff]
        %v650 = vld [vmem:[%s606 + $0x31] sm:$0xff]
        %v651 = vld [vmem:[%s606 + $0x41] sm:$0xff]
        %v652 = vld [vmem:[%s606 + $0x51] sm:$0xff]
        %v653 = vld [vmem:[%s606 + $0x61] sm:$0xff]
        %v654 = vld [vmem:[%s606 + $0x71] sm:$0xff]
        %v655 = vld [vmem:[%s606 + $0x2] sm:$0xff]
        %v656 = vld [vmem:[%s606 + $0x12] sm:$0xff]
        %v657 = vld [vmem:[%s606 + $0x22] sm:$0xff]
        %v658 = vld [vmem:[%s606 + $0x32] sm:$0xff]
        %v659 = vld [vmem:[%s606 + $0x42] sm:$0xff]
        %v660 = vld [vmem:[%s606 + $0x52] sm:$0xff]
        %v661 = vld [vmem:[%s606 + $0x62] sm:$0xff]
        %v662 = vld [vmem:[%s606 + $0x72] sm:$0xff]
        %s663 = scalar_lea.vmem [#allocation3], 32
        %v664 = vld [vmem:[%s663] sm:$0xff]
        %v665 = vld [vmem:[%s663 + $0x10] sm:$0xff]
        %v666 = vld [vmem:[%s663 + $0x20] sm:$0xff]
        %v667 = vld [vmem:[%s663 + $0x30] sm:$0xff]
        %v668 = vld [vmem:[%s663 + $0x40] sm:$0xff]
        %v669 = vld [vmem:[%s663 + $0x50] sm:$0xff]
        %v670 = vld [vmem:[%s663 + $0x60] sm:$0xff]
        %v671 = vld [vmem:[%s663 + $0x70] sm:$0xff]
        %v672 = vld [vmem:[%s663 + $0x1] sm:$0xff]
        %v673 = vld [vmem:[%s663 + $0x11] sm:$0xff]
        %v674 = vld [vmem:[%s663 + $0x21] sm:$0xff]
        %v675 = vld [vmem:[%s663 + $0x31] sm:$0xff]
        %v676 = vld [vmem:[%s663 + $0x41] sm:$0xff]
        %v677 = vld [vmem:[%s663 + $0x51] sm:$0xff]
        %v678 = vld [vmem:[%s663 + $0x61] sm:$0xff]
        %v679 = vld [vmem:[%s663 + $0x71] sm:$0xff]
        %v680 = vld [vmem:[%s663 + $0x2] sm:$0xff]
        %v681 = vld [vmem:[%s663 + $0x12] sm:$0xff]
        %v682 = vld [vmem:[%s663 + $0x22] sm:$0xff]
        %v683 = vld [vmem:[%s663 + $0x32] sm:$0xff]
        %v684 = vld [vmem:[%s663 + $0x42] sm:$0xff]
        %v685 = vld [vmem:[%s663 + $0x52] sm:$0xff]
        %v686 = vld [vmem:[%s663 + $0x62] sm:$0xff]
        %v687 = vld [vmem:[%s663 + $0x72] sm:$0xff]
        %v688 = vld [vmem:[%s304 + $0x1] sm:$0xff]
        %v689 = vld [vmem:[%s304 + $0x11] sm:$0xff]
        %v690 = vld [vmem:[%s304 + $0x21] sm:$0xff]
        %v691 = vld [vmem:[%s304 + $0x31] sm:$0xff]
        %v692 = vld [vmem:[%s304 + $0x41] sm:$0xff]
        %v693 = vld [vmem:[%s304 + $0x51] sm:$0xff]
        %v694 = vld [vmem:[%s304 + $0x61] sm:$0xff]
        %v695 = vld [vmem:[%s304 + $0x71] sm:$0xff]
        %v696 = vld [vmem:[#allocation9] sm:$0xff]
        %v697 = vld [vmem:[#allocation9 + $0x8] sm:$0xff]
        %v698 = vld [vmem:[#allocation9 + $0x10] sm:$0xff]
        %v699 = vld [vmem:[#allocation9 + $0x18] sm:$0xff]
        %v700 = vld [vmem:[#allocation9 + $0x20] sm:$0xff]
        %v701 = vld [vmem:[#allocation9 + $0x28] sm:$0xff]
        %v702 = vld [vmem:[#allocation9 + $0x30] sm:$0xff]
        %v703 = vld [vmem:[#allocation9 + $0x38] sm:$0xff]
        %v704 = vld [vmem:[#allocation9 + $0x40] sm:$0xff]
        %v705 = vld [vmem:[#allocation9 + $0x48] sm:$0xff]
        %v706 = vld [vmem:[#allocation9 + $0x50] sm:$0xff]
        %v707 = vld [vmem:[#allocation9 + $0x58] sm:$0xff]
        %v708 = vld [vmem:[#allocation9 + $0x60] sm:$0xff]
        %v709 = vld [vmem:[#allocation9 + $0x68] sm:$0xff]
        %v710 = vld [vmem:[#allocation9 + $0x70] sm:$0xff]
        %v711 = vld [vmem:[#allocation9 + $0x78] sm:$0xff]
        %v712 = vld [vmem:[#allocation9 + $0x80] sm:$0xff]
        %v713 = vld [vmem:[#allocation9 + $0x88] sm:$0xff]
        %v714 = vld [vmem:[#allocation9 + $0x90] sm:$0xff]
        %v715 = vld [vmem:[#allocation9 + $0x98] sm:$0xff]
        %v716 = vld [vmem:[#allocation9 + $0xa0] sm:$0xff]
        %v717 = vld [vmem:[#allocation9 + $0xa8] sm:$0xff]
        %v718 = vld [vmem:[#allocation9 + $0xb0] sm:$0xff]
        %v719 = vld [vmem:[#allocation9 + $0xb8] sm:$0xff]
        %v720 = vld [vmem:[#allocation9 + $0xc0] sm:$0xff]
        %v721 = vld [vmem:[#allocation9 + $0xc8] sm:$0xff]
        %v722 = vld [vmem:[#allocation9 + $0xd0] sm:$0xff]
        %v723 = vld [vmem:[#allocation9 + $0xd8] sm:$0xff]
        %v724 = vld [vmem:[#allocation9 + $0xe0] sm:$0xff]
        %v725 = vld [vmem:[#allocation9 + $0xe8] sm:$0xff]
        %v726 = vld [vmem:[#allocation9 + $0xf0] sm:$0xff]
        %v727 = vld [vmem:[#allocation9 + $0xf8] sm:$0xff]
        %v728 = vld [vmem:[#allocation9 + $0x100] sm:$0xff]
        %v729 = vld [vmem:[#allocation9 + $0x108] sm:$0xff]
        %v730 = vld [vmem:[#allocation9 + $0x110] sm:$0xff]
        %v731 = vld [vmem:[#allocation9 + $0x118] sm:$0xff]
        %v732 = vld [vmem:[#allocation9 + $0x120] sm:$0xff]
        %v733 = vld [vmem:[#allocation9 + $0x128] sm:$0xff]
        %v734 = vld [vmem:[#allocation9 + $0x130] sm:$0xff]
        %v735 = vld [vmem:[#allocation9 + $0x138] sm:$0xff]
        %v736 = vld [vmem:[#allocation9 + $0x140] sm:$0xff]
        %v737 = vld [vmem:[#allocation9 + $0x148] sm:$0xff]
        %v738 = vld [vmem:[#allocation9 + $0x150] sm:$0xff]
        %v739 = vld [vmem:[#allocation9 + $0x158] sm:$0xff]
        %v740 = vld [vmem:[#allocation9 + $0x160] sm:$0xff]
        %v741 = vld [vmem:[#allocation9 + $0x168] sm:$0xff]
        %v742 = vld [vmem:[#allocation9 + $0x170] sm:$0xff]
        %v743 = vld [vmem:[#allocation9 + $0x178] sm:$0xff]
        %v744 = vld [vmem:[#allocation9 + $0x180] sm:$0xff]
        %v745 = vld [vmem:[#allocation9 + $0x188] sm:$0xff]
        %v746 = vld [vmem:[#allocation9 + $0x190] sm:$0xff]
        %v747 = vld [vmem:[#allocation9 + $0x198] sm:$0xff]
        %v748 = vld [vmem:[#allocation9 + $0x1a0] sm:$0xff]
        %v749 = vld [vmem:[#allocation9 + $0x1a8] sm:$0xff]
        %v750 = vld [vmem:[#allocation9 + $0x1b0] sm:$0xff]
        %v751 = vld [vmem:[#allocation9 + $0x1b8] sm:$0xff]
        %v752 = vld [vmem:[#allocation9 + $0x1c0] sm:$0xff]
        %v753 = vld [vmem:[#allocation9 + $0x1c8] sm:$0xff]
        %v754 = vld [vmem:[#allocation9 + $0x1d0] sm:$0xff]
        %v755 = vld [vmem:[#allocation9 + $0x1d8] sm:$0xff]
        %v756 = vld [vmem:[#allocation9 + $0x1e0] sm:$0xff]
        %v757 = vld [vmem:[#allocation9 + $0x1e8] sm:$0xff]
        %v758 = vld [vmem:[#allocation9 + $0x1f0] sm:$0xff]
        %v759 = vld [vmem:[#allocation9 + $0x1f8] sm:$0xff]
        %v760 = vld [vmem:[#allocation9 + $0x200] sm:$0xff]
        %v761 = vld [vmem:[#allocation9 + $0x208] sm:$0xff]
        %v762 = vld [vmem:[#allocation9 + $0x210] sm:$0xff]
        %v763 = vld [vmem:[#allocation9 + $0x218] sm:$0xff]
        %v764 = vld [vmem:[#allocation9 + $0x220] sm:$0xff]
        %v765 = vld [vmem:[#allocation9 + $0x228] sm:$0xff]
        %v766 = vld [vmem:[#allocation9 + $0x230] sm:$0xff]
        %v767 = vld [vmem:[#allocation9 + $0x238] sm:$0xff]
        %v768 = vld [vmem:[#allocation9 + $0x240] sm:$0xff]
        %v769 = vld [vmem:[#allocation9 + $0x248] sm:$0xff]
        %v770 = vld [vmem:[#allocation9 + $0x250] sm:$0xff]
        %v771 = vld [vmem:[#allocation9 + $0x258] sm:$0xff]
        %v772 = vld [vmem:[#allocation9 + $0x260] sm:$0xff]
        %v773 = vld [vmem:[#allocation9 + $0x268] sm:$0xff]
        %v774 = vld [vmem:[#allocation9 + $0x270] sm:$0xff]
        %v775 = vld [vmem:[#allocation9 + $0x278] sm:$0xff]
        %v776 = vld [vmem:[#allocation9 + $0x280] sm:$0xff]
        %v777 = vld [vmem:[#allocation9 + $0x288] sm:$0xff]
        %v778 = vld [vmem:[#allocation9 + $0x290] sm:$0xff]
        %v779 = vld [vmem:[#allocation9 + $0x298] sm:$0xff]
        %v780 = vld [vmem:[#allocation9 + $0x2a0] sm:$0xff]
        %v781 = vld [vmem:[#allocation9 + $0x2a8] sm:$0xff]
        %v782 = vld [vmem:[#allocation9 + $0x2b0] sm:$0xff]
        %v783 = vld [vmem:[#allocation9 + $0x2b8] sm:$0xff]
        %v784 = vld [vmem:[#allocation9 + $0x2c0] sm:$0xff]
        %v785 = vld [vmem:[#allocation9 + $0x2c8] sm:$0xff]
        %v786 = vld [vmem:[#allocation9 + $0x2d0] sm:$0xff]
        %v787 = vld [vmem:[#allocation9 + $0x2d8] sm:$0xff]
        %v788 = vld [vmem:[#allocation9 + $0x2e0] sm:$0xff]
        %v789 = vld [vmem:[#allocation9 + $0x2e8] sm:$0xff]
        %v790 = vld [vmem:[#allocation9 + $0x2f0] sm:$0xff]
        %v791 = vld [vmem:[#allocation9 + $0x2f8] sm:$0xff]
        %v792 = vld [vmem:[#allocation9 + $0x300] sm:$0xff]
        %v793 = vld [vmem:[#allocation9 + $0x308] sm:$0xff]
        %v794 = vld [vmem:[#allocation9 + $0x310] sm:$0xff]
        %v795 = vld [vmem:[#allocation9 + $0x318] sm:$0xff]
        %v796 = vld [vmem:[#allocation9 + $0x320] sm:$0xff]
        %v797 = vld [vmem:[#allocation9 + $0x328] sm:$0xff]
        %v798 = vld [vmem:[#allocation9 + $0x330] sm:$0xff]
        %v799 = vld [vmem:[#allocation9 + $0x338] sm:$0xff]
        %v800 = vld [vmem:[#allocation9 + $0x340] sm:$0xff]
        %v801 = vld [vmem:[#allocation9 + $0x348] sm:$0xff]
        %v802 = vld [vmem:[#allocation9 + $0x350] sm:$0xff]
        %v803 = vld [vmem:[#allocation9 + $0x358] sm:$0xff]
        %v804 = vld [vmem:[#allocation9 + $0x360] sm:$0xff]
        %v805 = vld [vmem:[#allocation9 + $0x368] sm:$0xff]
        %v806 = vld [vmem:[#allocation9 + $0x370] sm:$0xff]
        %v807 = vld [vmem:[#allocation9 + $0x378] sm:$0xff]
        %v808 = vld [vmem:[#allocation9 + $0x380] sm:$0xff]
        %v809 = vld [vmem:[#allocation9 + $0x388] sm:$0xff]
        %v810 = vld [vmem:[#allocation9 + $0x390] sm:$0xff]
        %v811 = vld [vmem:[#allocation9 + $0x398] sm:$0xff]
        %v812 = vld [vmem:[#allocation9 + $0x3a0] sm:$0xff]
        %v813 = vld [vmem:[#allocation9 + $0x3a8] sm:$0xff]
        %v814 = vld [vmem:[#allocation9 + $0x3b0] sm:$0xff]
        %v815 = vld [vmem:[#allocation9 + $0x3b8] sm:$0xff]
        %v816 = vld [vmem:[#allocation9 + $0x3c0] sm:$0xff]
        %v817 = vld [vmem:[#allocation9 + $0x3c8] sm:$0xff]
        %v818 = vld [vmem:[#allocation9 + $0x3d0] sm:$0xff]
        %v819 = vld [vmem:[#allocation9 + $0x3d8] sm:$0xff]
        %v820 = vld [vmem:[#allocation9 + $0x3e0] sm:$0xff]
        %v821 = vld [vmem:[#allocation9 + $0x3e8] sm:$0xff]
        %v822 = vld [vmem:[#allocation9 + $0x3f0] sm:$0xff]
        %v823 = vld [vmem:[#allocation9 + $0x3f8] sm:$0xff]
        %v824 = vld [vmem:[#allocation9 + $0x400] sm:$0xff]
        %v825 = vld [vmem:[#allocation9 + $0x408] sm:$0xff]
        %v826 = vld [vmem:[#allocation9 + $0x410] sm:$0xff]
        %v827 = vld [vmem:[#allocation9 + $0x418] sm:$0xff]
        %v828 = vld [vmem:[#allocation9 + $0x420] sm:$0xff]
        %v829 = vld [vmem:[#allocation9 + $0x428] sm:$0xff]
        %v830 = vld [vmem:[#allocation9 + $0x430] sm:$0xff]
        %v831 = vld [vmem:[#allocation9 + $0x438] sm:$0xff]
        %v832 = vld [vmem:[#allocation9 + $0x440] sm:$0xff]
        %v833 = vld [vmem:[#allocation9 + $0x448] sm:$0xff]
        %v834 = vld [vmem:[#allocation9 + $0x450] sm:$0xff]
        %v835 = vld [vmem:[#allocation9 + $0x458] sm:$0xff]
        %v836 = vld [vmem:[#allocation9 + $0x460] sm:$0xff]
        %v837 = vld [vmem:[#allocation9 + $0x468] sm:$0xff]
        %v838 = vld [vmem:[#allocation9 + $0x470] sm:$0xff]
        %v839 = vld [vmem:[#allocation9 + $0x478] sm:$0xff]
        %v840 = vld [vmem:[#allocation9 + $0x480] sm:$0xff]
        %v841 = vld [vmem:[#allocation9 + $0x488] sm:$0xff]
        %v842 = vld [vmem:[#allocation9 + $0x490] sm:$0xff]
        %v843 = vld [vmem:[#allocation9 + $0x498] sm:$0xff]
        %v844 = vld [vmem:[#allocation9 + $0x4a0] sm:$0xff]
        %v845 = vld [vmem:[#allocation9 + $0x4a8] sm:$0xff]
        %v846 = vld [vmem:[#allocation9 + $0x4b0] sm:$0xff]
        %v847 = vld [vmem:[#allocation9 + $0x4b8] sm:$0xff]
        %v848 = vld [vmem:[#allocation9 + $0x4c0] sm:$0xff]
        %v849 = vld [vmem:[#allocation9 + $0x4c8] sm:$0xff]
        %v850 = vld [vmem:[#allocation9 + $0x4d0] sm:$0xff]
        %v851 = vld [vmem:[#allocation9 + $0x4d8] sm:$0xff]
        %v852 = vld [vmem:[#allocation9 + $0x4e0] sm:$0xff]
        %v853 = vld [vmem:[#allocation9 + $0x4e8] sm:$0xff]
        %v854 = vld [vmem:[#allocation9 + $0x4f0] sm:$0xff]
        %v855 = vld [vmem:[#allocation9 + $0x4f8] sm:$0xff]
        %v856 = vld [vmem:[%s4] sm:$0x1]
        %v858 = vperm.slane %v856, 0
        %860 = vmatpush.msra.mxu0 %v711
        %861 = vmatpush.msra.mxu0 %v710
        %862 = vmatpush.msra.mxu0 %v709
        %863 = vmatpush.msra.mxu0 %v708
        %864 = vmatpush.msra.mxu0 %v707
        %865 = vmatpush.msra.mxu0 %v706
        %866 = vmatpush.msra.mxu0 %v705
        %867 = vmatpush.msra.mxu0 %v704
        %868 = vmatpush.msra.mxu0 %v703
        %869 = vmatpush.msra.mxu0 %v702
        %870 = vmatpush.msra.mxu0 %v701
        %871 = vmatpush.msra.mxu0 %v700
        %872 = vmatpush.msra.mxu0 %v699
        %873 = vmatpush.msra.mxu0 %v698
        %874 = vmatpush.msra.mxu0 %v697
        %875 = vmatpush.msra.mxu0 %v696
        %876 = vmatmul.f32.gmra.mxu0 %v615
        %v877 = vpop.f32.mrf.mxu0
        %v878 = vadd.f32 %v858, %v877
        %879 = vmatmul.f32.gmra.mxu0 %v616
        %v880 = vpop.f32.mrf.mxu0
        %v881 = vadd.f32 %v858, %v880
        %882 = vmatmul.f32.gmra.mxu0 %v617
        %v883 = vpop.f32.mrf.mxu0
        %v884 = vadd.f32 %v858, %v883
        %885 = vmatmul.f32.gmra.mxu0 %v618
        %v886 = vpop.f32.mrf.mxu0
        %v887 = vadd.f32 %v858, %v886
        %888 = vmatmul.f32.gmra.mxu0 %v619
        %v889 = vpop.f32.mrf.mxu0
        %v890 = vadd.f32 %v858, %v889
        %891 = vmatmul.f32.gmra.mxu0 %v620
        %v892 = vpop.f32.mrf.mxu0
        %v893 = vadd.f32 %v858, %v892
        %894 = vmatmul.f32.gmra.mxu0 %v621
        %v895 = vpop.f32.mrf.mxu0
        %v896 = vadd.f32 %v858, %v895
        %897 = vmatmul.f32.gmra.mxu0 %v622
        %v898 = vpop.f32.mrf.mxu0
        %v899 = vadd.f32 %v858, %v898
        %900 = vdwg.mxu0
        %901 = vmatpush.msra.mxu0 %v727
        %902 = vmatpush.msra.mxu0 %v726
        %903 = vmatpush.msra.mxu0 %v725
        %904 = vmatpush.msra.mxu0 %v724
        %905 = vmatpush.msra.mxu0 %v723
        %906 = vmatpush.msra.mxu0 %v722
        %907 = vmatpush.msra.mxu0 %v721
        %908 = vmatpush.msra.mxu0 %v720
        %909 = vmatpush.msra.mxu0 %v719
        %910 = vmatpush.msra.mxu0 %v718
        %911 = vmatpush.msra.mxu0 %v717
        %912 = vmatpush.msra.mxu0 %v716
        %913 = vmatpush.msra.mxu0 %v715
        %914 = vmatpush.msra.mxu0 %v714
        %915 = vmatpush.msra.mxu0 %v713
        %916 = vmatpush.msra.mxu0 %v712
        %917 = vmatmul.f32.gmra.mxu0 %v623
        %v918 = vpop.f32.mrf.mxu0
        %v919 = vadd.f32 %v878, %v918
        %920 = vmatmul.f32.gmra.mxu0 %v624
        %v921 = vpop.f32.mrf.mxu0
        %v922 = vadd.f32 %v881, %v921
        %923 = vmatmul.f32.gmra.mxu0 %v625
        %v924 = vpop.f32.mrf.mxu0
        %v925 = vadd.f32 %v884, %v924
        %926 = vmatmul.f32.gmra.mxu0 %v626
        %v927 = vpop.f32.mrf.mxu0
        %v928 = vadd.f32 %v887, %v927
        %929 = vmatmul.f32.gmra.mxu0 %v627
        %v930 = vpop.f32.mrf.mxu0
        %v931 = vadd.f32 %v890, %v930
        %932 = vmatmul.f32.gmra.mxu0 %v628
        %v933 = vpop.f32.mrf.mxu0
        %v934 = vadd.f32 %v893, %v933
        %935 = vmatmul.f32.gmra.mxu0 %v629
        %v936 = vpop.f32.mrf.mxu0
        %v937 = vadd.f32 %v896, %v936
        %938 = vmatmul.f32.gmra.mxu0 %v630
        %v939 = vpop.f32.mrf.mxu0
        %v940 = vadd.f32 %v899, %v939
        %941 = vdwg.mxu0
        %942 = vmatpush.msra.mxu0 %v743
        %943 = vmatpush.msra.mxu0 %v742
        %944 = vmatpush.msra.mxu0 %v741
        %945 = vmatpush.msra.mxu0 %v740
        %946 = vmatpush.msra.mxu0 %v739
        %947 = vmatpush.msra.mxu0 %v738
        %948 = vmatpush.msra.mxu0 %v737
        %949 = vmatpush.msra.mxu0 %v736
        %950 = vmatpush.msra.mxu0 %v735
        %951 = vmatpush.msra.mxu0 %v734
        %952 = vmatpush.msra.mxu0 %v733
        %953 = vmatpush.msra.mxu0 %v732
        %954 = vmatpush.msra.mxu0 %v731
        %955 = vmatpush.msra.mxu0 %v730
        %956 = vmatpush.msra.mxu0 %v729
        %957 = vmatpush.msra.mxu0 %v728
        %958 = vmatmul.f32.gmra.mxu0 %v631
        %v959 = vpop.f32.mrf.mxu0
        %v960 = vadd.f32 %v919, %v959
        %961 = vmatmul.f32.gmra.mxu0 %v632
        %v962 = vpop.f32.mrf.mxu0
        %v963 = vadd.f32 %v922, %v962
        %964 = vmatmul.f32.gmra.mxu0 %v633
        %v965 = vpop.f32.mrf.mxu0
        %v966 = vadd.f32 %v925, %v965
        %967 = vmatmul.f32.gmra.mxu0 %v634
        %v968 = vpop.f32.mrf.mxu0
        %v969 = vadd.f32 %v928, %v968
        %970 = vmatmul.f32.gmra.mxu0 %v635
        %v971 = vpop.f32.mrf.mxu0
        %v972 = vadd.f32 %v931, %v971
        %973 = vmatmul.f32.gmra.mxu0 %v636
        %v974 = vpop.f32.mrf.mxu0
        %v975 = vadd.f32 %v934, %v974
        %976 = vmatmul.f32.gmra.mxu0 %v637
        %v977 = vpop.f32.mrf.mxu0
        %v978 = vadd.f32 %v937, %v977
        %979 = vmatmul.f32.gmra.mxu0 %v638
        %v980 = vpop.f32.mrf.mxu0
        %v981 = vadd.f32 %v940, %v980
        %982 = vdwg.mxu0
        %983 = vmatpush.msra.mxu0 %v759
        %984 = vmatpush.msra.mxu0 %v758
        %985 = vmatpush.msra.mxu0 %v757
        %986 = vmatpush.msra.mxu0 %v756
        %987 = vmatpush.msra.mxu0 %v755
        %988 = vmatpush.msra.mxu0 %v754
        %989 = vmatpush.msra.mxu0 %v753
        %990 = vmatpush.msra.mxu0 %v752
        %991 = vmatpush.msra.mxu0 %v751
        %992 = vmatpush.msra.mxu0 %v750
        %993 = vmatpush.msra.mxu0 %v749
        %994 = vmatpush.msra.mxu0 %v748
        %995 = vmatpush.msra.mxu0 %v747
        %996 = vmatpush.msra.mxu0 %v746
        %997 = vmatpush.msra.mxu0 %v745
        %998 = vmatpush.msra.mxu0 %v744
        %999 = vmatmul.f32.gmra.mxu0 %v639
        %v1000 = vpop.f32.mrf.mxu0
        %v1001 = vadd.f32 %v960, %v1000
        %1002 = vmatmul.f32.gmra.mxu0 %v640
        %v1003 = vpop.f32.mrf.mxu0
        %v1004 = vadd.f32 %v963, %v1003
        %1005 = vmatmul.f32.gmra.mxu0 %v641
        %v1006 = vpop.f32.mrf.mxu0
        %v1007 = vadd.f32 %v966, %v1006
        %1008 = vmatmul.f32.gmra.mxu0 %v642
        %v1009 = vpop.f32.mrf.mxu0
        %v1010 = vadd.f32 %v969, %v1009
        %1011 = vmatmul.f32.gmra.mxu0 %v643
        %v1012 = vpop.f32.mrf.mxu0
        %v1013 = vadd.f32 %v972, %v1012
        %1014 = vmatmul.f32.gmra.mxu0 %v644
        %v1015 = vpop.f32.mrf.mxu0
        %v1016 = vadd.f32 %v975, %v1015
        %1017 = vmatmul.f32.gmra.mxu0 %v645
        %v1018 = vpop.f32.mrf.mxu0
        %v1019 = vadd.f32 %v978, %v1018
        %1020 = vmatmul.f32.gmra.mxu0 %v646
        %v1021 = vpop.f32.mrf.mxu0
        %v1022 = vadd.f32 %v981, %v1021
        %1023 = vdwg.mxu0
        %1024 = vmatpush.msra.mxu0 %v775
        %1025 = vmatpush.msra.mxu0 %v774
        %1026 = vmatpush.msra.mxu0 %v773
        %1027 = vmatpush.msra.mxu0 %v772
        %1028 = vmatpush.msra.mxu0 %v771
        %1029 = vmatpush.msra.mxu0 %v770
        %1030 = vmatpush.msra.mxu0 %v769
        %1031 = vmatpush.msra.mxu0 %v768
        %1032 = vmatpush.msra.mxu0 %v767
        %1033 = vmatpush.msra.mxu0 %v766
        %1034 = vmatpush.msra.mxu0 %v765
        %1035 = vmatpush.msra.mxu0 %v764
        %1036 = vmatpush.msra.mxu0 %v763
        %1037 = vmatpush.msra.mxu0 %v762
        %1038 = vmatpush.msra.mxu0 %v761
        %1039 = vmatpush.msra.mxu0 %v760
        %1040 = vmatmul.f32.gmra.mxu0 %v647
        %v1041 = vpop.f32.mrf.mxu0
        %v1042 = vadd.f32 %v1001, %v1041
        %1043 = vmatmul.f32.gmra.mxu0 %v648
        %v1044 = vpop.f32.mrf.mxu0
        %v1045 = vadd.f32 %v1004, %v1044
        %1046 = vmatmul.f32.gmra.mxu0 %v649
        %v1047 = vpop.f32.mrf.mxu0
        %v1048 = vadd.f32 %v1007, %v1047
        %1049 = vmatmul.f32.gmra.mxu0 %v650
        %v1050 = vpop.f32.mrf.mxu0
        %v1051 = vadd.f32 %v1010, %v1050
        %1052 = vmatmul.f32.gmra.mxu0 %v651
        %v1053 = vpop.f32.mrf.mxu0
        %v1054 = vadd.f32 %v1013, %v1053
        %1055 = vmatmul.f32.gmra.mxu0 %v652
        %v1056 = vpop.f32.mrf.mxu0
        %v1057 = vadd.f32 %v1016, %v1056
        %1058 = vmatmul.f32.gmra.mxu0 %v653
        %v1059 = vpop.f32.mrf.mxu0
        %v1060 = vadd.f32 %v1019, %v1059
        %1061 = vmatmul.f32.gmra.mxu0 %v654
        %v1062 = vpop.f32.mrf.mxu0
        %v1063 = vadd.f32 %v1022, %v1062
        %1064 = vdwg.mxu0
        %1065 = vmatpush.msra.mxu0 %v791
        %1066 = vmatpush.msra.mxu0 %v790
        %1067 = vmatpush.msra.mxu0 %v789
        %1068 = vmatpush.msra.mxu0 %v788
        %1069 = vmatpush.msra.mxu0 %v787
        %1070 = vmatpush.msra.mxu0 %v786
        %1071 = vmatpush.msra.mxu0 %v785
        %1072 = vmatpush.msra.mxu0 %v784
        %1073 = vmatpush.msra.mxu0 %v783
        %1074 = vmatpush.msra.mxu0 %v782
        %1075 = vmatpush.msra.mxu0 %v781
        %1076 = vmatpush.msra.mxu0 %v780
        %1077 = vmatpush.msra.mxu0 %v779
        %1078 = vmatpush.msra.mxu0 %v778
        %1079 = vmatpush.msra.mxu0 %v777
        %1080 = vmatpush.msra.mxu0 %v776
        %1081 = vmatmul.f32.gmra.mxu0 %v655
        %v1082 = vpop.f32.mrf.mxu0
        %v1083 = vadd.f32 %v1042, %v1082
        %1084 = vmatmul.f32.gmra.mxu0 %v656
        %v1085 = vpop.f32.mrf.mxu0
        %v1086 = vadd.f32 %v1045, %v1085
        %1087 = vmatmul.f32.gmra.mxu0 %v657
        %v1088 = vpop.f32.mrf.mxu0
        %v1089 = vadd.f32 %v1048, %v1088
        %1090 = vmatmul.f32.gmra.mxu0 %v658
        %v1091 = vpop.f32.mrf.mxu0
        %v1092 = vadd.f32 %v1051, %v1091
        %1093 = vmatmul.f32.gmra.mxu0 %v659
        %v1094 = vpop.f32.mrf.mxu0
        %v1095 = vadd.f32 %v1054, %v1094
        %1096 = vmatmul.f32.gmra.mxu0 %v660
        %v1097 = vpop.f32.mrf.mxu0
        %v1098 = vadd.f32 %v1057, %v1097
        %1099 = vmatmul.f32.gmra.mxu0 %v661
        %v1100 = vpop.f32.mrf.mxu0
        %v1101 = vadd.f32 %v1060, %v1100
        %1102 = vmatmul.f32.gmra.mxu0 %v662
        %v1103 = vpop.f32.mrf.mxu0
        %v1104 = vadd.f32 %v1063, %v1103
        %1105 = vdwg.mxu0
        %1106 = vmatpush.msra.mxu0 %v807
        %1107 = vmatpush.msra.mxu0 %v806
        %1108 = vmatpush.msra.mxu0 %v805
        %1109 = vmatpush.msra.mxu0 %v804
        %1110 = vmatpush.msra.mxu0 %v803
        %1111 = vmatpush.msra.mxu0 %v802
        %1112 = vmatpush.msra.mxu0 %v801
        %1113 = vmatpush.msra.mxu0 %v800
        %1114 = vmatpush.msra.mxu0 %v799
        %1115 = vmatpush.msra.mxu0 %v798
        %1116 = vmatpush.msra.mxu0 %v797
        %1117 = vmatpush.msra.mxu0 %v796
        %1118 = vmatpush.msra.mxu0 %v795
        %1119 = vmatpush.msra.mxu0 %v794
        %1120 = vmatpush.msra.mxu0 %v793
        %1121 = vmatpush.msra.mxu0 %v792
        %1122 = vmatmul.f32.gmra.mxu0 %v664
        %v1123 = vpop.f32.mrf.mxu0
        %v1124 = vadd.f32 %v1083, %v1123
        %1125 = vmatmul.f32.gmra.mxu0 %v665
        %v1126 = vpop.f32.mrf.mxu0
        %v1127 = vadd.f32 %v1086, %v1126
        %1128 = vmatmul.f32.gmra.mxu0 %v666
        %v1129 = vpop.f32.mrf.mxu0
        %v1130 = vadd.f32 %v1089, %v1129
        %1131 = vmatmul.f32.gmra.mxu0 %v667
        %v1132 = vpop.f32.mrf.mxu0
        %v1133 = vadd.f32 %v1092, %v1132
        %1134 = vmatmul.f32.gmra.mxu0 %v668
        %v1135 = vpop.f32.mrf.mxu0
        %v1136 = vadd.f32 %v1095, %v1135
        %1137 = vmatmul.f32.gmra.mxu0 %v669
        %v1138 = vpop.f32.mrf.mxu0
        %v1139 = vadd.f32 %v1098, %v1138
        %1140 = vmatmul.f32.gmra.mxu0 %v670
        %v1141 = vpop.f32.mrf.mxu0
        %v1142 = vadd.f32 %v1101, %v1141
        %1143 = vmatmul.f32.gmra.mxu0 %v671
        %v1144 = vpop.f32.mrf.mxu0
        %v1145 = vadd.f32 %v1104, %v1144
        %1146 = vdwg.mxu0
        %1147 = vmatpush.msra.mxu0 %v823
        %1148 = vmatpush.msra.mxu0 %v822
        %1149 = vmatpush.msra.mxu0 %v821
        %1150 = vmatpush.msra.mxu0 %v820
        %1151 = vmatpush.msra.mxu0 %v819
        %1152 = vmatpush.msra.mxu0 %v818
        %1153 = vmatpush.msra.mxu0 %v817
        %1154 = vmatpush.msra.mxu0 %v816
        %1155 = vmatpush.msra.mxu0 %v815
        %1156 = vmatpush.msra.mxu0 %v814
        %1157 = vmatpush.msra.mxu0 %v813
        %1158 = vmatpush.msra.mxu0 %v812
        %1159 = vmatpush.msra.mxu0 %v811
        %1160 = vmatpush.msra.mxu0 %v810
        %1161 = vmatpush.msra.mxu0 %v809
        %1162 = vmatpush.msra.mxu0 %v808
        %1163 = vmatmul.f32.gmra.mxu0 %v672
        %v1164 = vpop.f32.mrf.mxu0
        %v1165 = vadd.f32 %v1124, %v1164
        %1166 = vmatmul.f32.gmra.mxu0 %v673
        %v1167 = vpop.f32.mrf.mxu0
        %v1168 = vadd.f32 %v1127, %v1167
        %1169 = vmatmul.f32.gmra.mxu0 %v674
        %v1170 = vpop.f32.mrf.mxu0
        %v1171 = vadd.f32 %v1130, %v1170
        %1172 = vmatmul.f32.gmra.mxu0 %v675
        %v1173 = vpop.f32.mrf.mxu0
        %v1174 = vadd.f32 %v1133, %v1173
        %1175 = vmatmul.f32.gmra.mxu0 %v676
        %v1176 = vpop.f32.mrf.mxu0
        %v1177 = vadd.f32 %v1136, %v1176
        %1178 = vmatmul.f32.gmra.mxu0 %v677
        %v1179 = vpop.f32.mrf.mxu0
        %v1180 = vadd.f32 %v1139, %v1179
        %1181 = vmatmul.f32.gmra.mxu0 %v678
        %v1182 = vpop.f32.mrf.mxu0
        %v1183 = vadd.f32 %v1142, %v1182
        %1184 = vmatmul.f32.gmra.mxu0 %v679
        %v1185 = vpop.f32.mrf.mxu0
        %v1186 = vadd.f32 %v1145, %v1185
        %1187 = vdwg.mxu0
        %1188 = vmatpush.msra.mxu0 %v839
        %1189 = vmatpush.msra.mxu0 %v838
        %1190 = vmatpush.msra.mxu0 %v837
        %1191 = vmatpush.msra.mxu0 %v836
        %1192 = vmatpush.msra.mxu0 %v835
        %1193 = vmatpush.msra.mxu0 %v834
        %1194 = vmatpush.msra.mxu0 %v833
        %1195 = vmatpush.msra.mxu0 %v832
        %1196 = vmatpush.msra.mxu0 %v831
        %1197 = vmatpush.msra.mxu0 %v830
        %1198 = vmatpush.msra.mxu0 %v829
        %1199 = vmatpush.msra.mxu0 %v828
        %1200 = vmatpush.msra.mxu0 %v827
        %1201 = vmatpush.msra.mxu0 %v826
        %1202 = vmatpush.msra.mxu0 %v825
        %1203 = vmatpush.msra.mxu0 %v824
        %1204 = vmatmul.f32.gmra.mxu0 %v680
        %v1205 = vpop.f32.mrf.mxu0
        %v1206 = vadd.f32 %v1165, %v1205
        %1207 = vmatmul.f32.gmra.mxu0 %v681
        %v1208 = vpop.f32.mrf.mxu0
        %v1209 = vadd.f32 %v1168, %v1208
        %1210 = vmatmul.f32.gmra.mxu0 %v682
        %v1211 = vpop.f32.mrf.mxu0
        %v1212 = vadd.f32 %v1171, %v1211
        %1213 = vmatmul.f32.gmra.mxu0 %v683
        %v1214 = vpop.f32.mrf.mxu0
        %v1215 = vadd.f32 %v1174, %v1214
        %1216 = vmatmul.f32.gmra.mxu0 %v684
        %v1217 = vpop.f32.mrf.mxu0
        %v1218 = vadd.f32 %v1177, %v1217
        %1219 = vmatmul.f32.gmra.mxu0 %v685
        %v1220 = vpop.f32.mrf.mxu0
        %v1221 = vadd.f32 %v1180, %v1220
        %1222 = vmatmul.f32.gmra.mxu0 %v686
        %v1223 = vpop.f32.mrf.mxu0
        %v1224 = vadd.f32 %v1183, %v1223
        %1225 = vmatmul.f32.gmra.mxu0 %v687
        %v1226 = vpop.f32.mrf.mxu0
        %v1227 = vadd.f32 %v1186, %v1226
        %1228 = vdwg.mxu0
        %1229 = vmatpush.msra.mxu0 %v855
        %1230 = vmatpush.msra.mxu0 %v854
        %1231 = vmatpush.msra.mxu0 %v853
        %1232 = vmatpush.msra.mxu0 %v852
        %1233 = vmatpush.msra.mxu0 %v851
        %1234 = vmatpush.msra.mxu0 %v850
        %1235 = vmatpush.msra.mxu0 %v849
        %1236 = vmatpush.msra.mxu0 %v848
        %1237 = vmatpush.msra.mxu0 %v847
        %1238 = vmatpush.msra.mxu0 %v846
        %1239 = vmatpush.msra.mxu0 %v845
        %1240 = vmatpush.msra.mxu0 %v844
        %1241 = vmatpush.msra.mxu0 %v843
        %1242 = vmatpush.msra.mxu0 %v842
        %1243 = vmatpush.msra.mxu0 %v841
        %1244 = vmatpush.msra.mxu0 %v840
        %1245 = vmatmul.f32.gmra.mxu0 %v688
        %v1246 = vpop.f32.mrf.mxu0
        %v1247 = vadd.f32 %v1206, %v1246
        %1248 = vmatmul.f32.gmra.mxu0 %v689
        %v1249 = vpop.f32.mrf.mxu0
        %v1250 = vadd.f32 %v1209, %v1249
        %1251 = vmatmul.f32.gmra.mxu0 %v690
        %v1252 = vpop.f32.mrf.mxu0
        %v1253 = vadd.f32 %v1212, %v1252
        %1254 = vmatmul.f32.gmra.mxu0 %v691
        %v1255 = vpop.f32.mrf.mxu0
        %v1256 = vadd.f32 %v1215, %v1255
        %1257 = vmatmul.f32.gmra.mxu0 %v692
        %v1258 = vpop.f32.mrf.mxu0
        %v1259 = vadd.f32 %v1218, %v1258
        %1260 = vmatmul.f32.gmra.mxu0 %v693
        %v1261 = vpop.f32.mrf.mxu0
        %v1262 = vadd.f32 %v1221, %v1261
        %1263 = vmatmul.f32.gmra.mxu0 %v694
        %v1264 = vpop.f32.mrf.mxu0
        %v1265 = vadd.f32 %v1224, %v1264
        %1266 = vmatmul.f32.gmra.mxu0 %v695
        %v1267 = vpop.f32.mrf.mxu0
        %v1268 = vadd.f32 %v1227, %v1267
        %1269 = vdwg.mxu0
        %v1270 = vmax.f32 %v1247, 0.0
        %v1271 = vmax.f32 %v1250, 0.0
        %v1272 = vmax.f32 %v1253, 0.0
        %v1273 = vmax.f32 %v1256, 0.0
        %v1274 = vmax.f32 %v1259, 0.0
        %v1275 = vmax.f32 %v1262, 0.0
        %v1276 = vmax.f32 %v1265, 0.0
        %v1277 = vmax.f32 %v1268, 0.0
        %1278 = vst [vmem:[%s277] sm:$0xff] %v1270
        %1279 = vst [vmem:[%s277 + $0x8] sm:$0xff] %v1271
        %1280 = vst [vmem:[%s277 + $0x10] sm:$0xff] %v1272
        %1281 = vst [vmem:[%s277 + $0x18] sm:$0xff] %v1273
        %1282 = vst [vmem:[%s277 + $0x20] sm:$0xff] %v1274
        %1283 = vst [vmem:[%s277 + $0x28] sm:$0xff] %v1275
        %1284 = vst [vmem:[%s277 + $0x30] sm:$0xff] %v1276
        %1285 = vst [vmem:[%s277 + $0x38] sm:$0xff] %v1277
        %s1286 = sand.u32 %s141, 1
        %s1287 = scalar_lea.sflag [#allocation6], %s1286
        %s1288 = sand.u32 %s141, 1
        %s1289 = smul.addr %s1288, 64
        %s1290 = scalar_lea.vmem [#allocation10], %s1289
        // Predicated region
        $region53: #{tpu_custom_call.1} parent=39 // pred_check
          %p1291 = pneg %p151
        $region54: #{tpu_custom_call.1} parent=39 // pred_check_branch
          %1293 = sbr.rel (%p1291) target = $region56
        $region55: #{tpu_custom_call.1} parent=39 // pred_region
          %1295 = vsyncadd %s1287, 0
          %s1296 = smul.addr %s23, 8
          %s1297 = smul.addr %s1296, 8
          %s1298 = scalar_lea.hbm %s5, %s1297
          %s1299 = sshll.u32 %s1290, 4
          %s1300 = int_to_ptr.vmem [resolvable:$true] %s1299
          %s1301 = sshll.u32 %s1298, 4
          %s1302 = int_to_ptr.hbm [resolvable:$true] %s1301
          %1307 = dma.vmem_to_hbm [thread:$0]  %s1300, 1024, %s1302, %s1287, 128, 128, 8
        $region56: #{tpu_custom_call.1} parent=39 // pred_fallthru
          _
      $region40: #{tpu_custom_call.1} parent=5 // pred_fallthru
        _
      %p1308 = scmp.le.s32.totalorder 2, %s18
      // Predicated region
      $region57: #{tpu_custom_call.1} parent=5 // pred_check
        %p1309 = pneg %p1308
      $region58: #{tpu_custom_call.1} parent=5 // pred_check_branch
        %1311 = sbr.rel (%p1309) target = $region60
      $region59: #{tpu_custom_call.1} parent=5 // pred_region
        %s1312 = ssub.s32 %s18, 2
        // Predicated region
        $region61: #{tpu_custom_call.1} parent=59 // pred_check
          %p1313 = pneg %p157
        $region62: #{tpu_custom_call.1} parent=59 // pred_check_branch
          %1315 = sbr.rel (%p1313) target = $region64
        $region63: #{tpu_custom_call.1} parent=59 // pred_region
          %s1316 = sand.u32 %s142, 1
          %s1317 = scalar_lea.sflag [#allocation6], %s1316
          %s1318 = sand.u32 %s142, 1
          %s1319 = smul.addr %s1318, 64
          %s1320 = scalar_lea.vmem [#allocation10], %s1319
          %1322 = dma.done %s1317, 1024
        $region64: #{tpu_custom_call.1} parent=59 // pred_fallthru
          _
      $region60: #{tpu_custom_call.1} parent=5 // pred_fallthru
        _
    $region6: #{tpu_custom_call.1} parent=1 // loop_footer
      %s22 = sadd.s32 1, %s18
    $region7: #{tpu_custom_call.1} parent=1 // loop_footer_branch
      %17 = sbr.rel target = $region3
    $region8: #{tpu_custom_call.1} parent=1 // loop_exit
      _
    %1323 = vsyncpa [#allocation5], 1
    %s1324 = scalar_lea.sflag [#allocation5], 1
    %1325 = vsyncpa %s1324, 1
    %1326 = vsyncpa [#allocation8], 1
    %1327 = vsyncpa [#allocation6], 1
    %s1328 = scalar_lea.sflag [#allocation6], 1
    %1329 = vsyncpa %s1328, 1

</llo_original>
